<compile_context>
chip_gen: v6e
topology: v6e:2x2x1
jax: 0.10.0
libtpu: 0.0.40
codegen_flags: <defaults>
</compile_context>

<pallas_src>
import jax
import jax.numpy as jnp
from jax import lax
from jax.experimental import pallas as pl
from jax.experimental.pallas import tpu as pltpu
import numpy as np


# -----------------------------------------------------------------------------
# Fused per-image kernel
# -----------------------------------------------------------------------------
def mnist_kernel(x_ref, t1_ref, t2_ref, wf1_ref, wf2_ref, wf3_ref, o_ref):
    f32 = jnp.float32
    bf16 = jnp.bfloat16

    def mm(a, b):
        # bf16 operands on the MXU, f32 accumulation.
        return jnp.dot(a.astype(bf16), b.astype(bf16), preferred_element_type=f32)

    x = x_ref[0]                                                    # [28, 28] f32

    # ---- conv1 (5x5, 1->6): in-kernel row-im2col + one banded MXU matmul ----
    # bias is folded into t1 via the trailing ones column (K = 5*28 + 1).
    ones24 = jnp.ones((24, 1), f32)
    a1 = jnp.concatenate([x[di:di + 24, :] for di in range(5)] + [ones24],
                         axis=1)                                    # [24, 141]
    y1 = jnp.maximum(mm(a1, t1_ref[...]), 0.0)                      # [24, 144]
    # y1 columns: lanes [0:72] = even output cols, [72:144] = odd (co*12 + j//2).

    # ---- pool1 (2x2): columns = half-split max, rows = one-hot selection ----
    c1 = jnp.maximum(y1[:, :72], y1[:, 72:])                        # [24, 72]
    rr = lax.broadcasted_iota(jnp.int32, (12, 24), 0)
    cc = lax.broadcasted_iota(jnp.int32, (12, 24), 1)
    sel_e = (cc == 2 * rr).astype(f32)                              # [12, 24]
    sel_o = (cc == 2 * rr + 1).astype(f32)
    p1 = jnp.maximum(mm(sel_e, c1), mm(sel_o, c1))                  # [12, 72]

    # ---- conv2 (5x5, 6->16): one K-stacked banded matmul, 8 valid rows only ----
    ones8 = jnp.ones((8, 1), f32)
    a2 = jnp.concatenate([p1[di:di + 8, :] for di in range(5)] + [ones8],
                         axis=1)                                    # [8, 361]
    y2 = jnp.maximum(mm(a2, t2_ref[...]), 0.0)                      # [8, 128]
    # y2 columns: lanes [0:64] = even output cols, [64:128] = odd (co2*4 + j2//2).

    # ---- pool2 (2x2): columns = half-split max, rows = pair max + flatten ----
    c2 = jnp.maximum(y2[:, :64], y2[:, 64:])                        # [8, 64]
    p2 = jnp.concatenate(
        [jnp.maximum(c2[2 * h:2 * h + 1, :], c2[2 * h + 1:2 * h + 2, :])
         for h in range(4)] + [jnp.ones((1, 1), f32)],
        axis=1)                                                     # [1, 257]
    # p2 lanes: hp*64 + co2*4 + wp  (fc1 weight is permuted to match).

    # ---- MLP head (biases folded via the ones column appended to each input) ----
    h1 = jnp.maximum(mm(p2, wf1_ref[...]), 0.0)                     # [1, 120]
    h1 = jnp.concatenate([h1, jnp.ones((1, 1), f32)], axis=1)       # [1, 121]
    h2 = jnp.maximum(mm(h1, wf2_ref[...]), 0.0)                     # [1, 84]
    h2 = jnp.concatenate([h2, jnp.ones((1, 1), f32)], axis=1)       # [1, 85]
    logits = mm(h2, wf3_ref[...])                                   # [1, 128]

    # ---- softmax (padded lanes carry a -1e30 bias and underflow to exactly 0) ----
    m = jnp.max(logits, axis=-1, keepdims=True)
    e = jnp.exp(logits - m)
    s = jnp.sum(e, axis=-1, keepdims=True)
    probs = e * pl.reciprocal(s, approx=True)                       # [1, 128]
    o_ref[0] = jnp.broadcast_to(probs, (8, 128))


# -----------------------------------------------------------------------------
# One-time parameter preparation (banded weights, pooling column order, bias
# folds, flatten-order permutation, bf16 cast).  PyTorch-native param layouts.
# -----------------------------------------------------------------------------
def prepare_params(params):
    (c1w, c1b, c2w, c2b, f1w, f1b, f2w, f2b, f3w, f3b) = params
    f32, bf16 = jnp.float32, jnp.bfloat16

    # conv1 banded weight: rows = ki*28 + jp (im2col K), cols = (j%2)*72 + co*12 + j//2.
    w1 = c1w[:, 0, :, :].astype(f32)                                # [6,5,5] (co,ki,kj)
    dj = jnp.arange(28)[:, None] - jnp.arange(24)[None, :]          # jp - j
    band1 = ((dj >= 0) & (dj < 5)).astype(f32)                      # [28,24]
    t1 = w1[:, :, jnp.clip(dj, 0, 4)] * band1                       # [6,5,28,24]
    t1 = jnp.transpose(t1, (1, 2, 0, 3)).reshape(140, 6, 12, 2)     # (ki,jp),co,j//2,j%2
    t1 = jnp.transpose(t1, (0, 3, 1, 2)).reshape(140, 144)
    b1row = jnp.tile(jnp.repeat(c1b.astype(f32), 12), 2).reshape(1, 144)
    t1 = jnp.concatenate([t1, b1row], axis=0).astype(bf16)          # [141, 144]

    # conv2 banded weight: rows = ki*72 + ci*12 + jp, cols = (j2%2)*64 + co2*4 + j2//2.
    w2 = c2w.astype(f32)                                            # [16,6,5,5] (co,ci,ki,kj)
    d2 = jnp.arange(12)[:, None] - jnp.arange(8)[None, :]           # jp - j2
    band2 = ((d2 >= 0) & (d2 < 5)).astype(f32)                      # [12,8]
    t2 = w2[:, :, :, jnp.clip(d2, 0, 4)] * band2                    # [16,6,5,12,8]
    t2 = jnp.transpose(t2, (2, 1, 3, 0, 4)).reshape(360, 16, 4, 2)  # (ki,ci,jp),co,j2//2,j2%2
    t2 = jnp.transpose(t2, (0, 3, 1, 2)).reshape(360, 128)
    b2row = jnp.tile(jnp.repeat(c2b.astype(f32), 4), 2).reshape(1, 128)
    t2 = jnp.concatenate([t2, b2row], axis=0).astype(bf16)          # [361, 128]

    # fc1: PyTorch view(-1,256) order is co2*16 + hp*4 + wp; the kernel's
    # flattened pool-2 layout is hp*64 + co2*4 + wp -> permute the weight.
    wf1 = f1w.T.astype(f32).reshape(16, 4, 4, 120)                  # (co2,hp,wp,n)
    wf1 = jnp.transpose(wf1, (1, 0, 2, 3)).reshape(256, 120)        # (hp,co2,wp),n
    wf1 = jnp.concatenate([wf1, f1b.astype(f32).reshape(1, 120)],
                          axis=0).astype(bf16)                      # [257, 120]

    wf2 = jnp.concatenate([f2w.T.astype(f32), f2b.astype(f32).reshape(1, 84)],
                          axis=0).astype(bf16)                      # [121, 84]

    # fc3 padded to 128 lanes; padded logits get a -1e30 bias -> softmax gives 0.
    w3 = jnp.concatenate([f3w.T.astype(f32), jnp.zeros((84, 118), f32)], axis=1)
    b3 = jnp.concatenate([f3b.astype(f32), jnp.full((118,), -1e30, f32)]).reshape(1, 128)
    wf3 = jnp.concatenate([w3, b3], axis=0).astype(bf16)            # [85, 128]

    return (t1, t2, wf1, wf2, wf3)


# -----------------------------------------------------------------------------
# Forward wrapper: one pallas_call, parallel batch grid, one image per step
# -----------------------------------------------------------------------------
def mnist_net_forward(x_nchw, prepped):
    """Matches MNISTNet.forward(); x_nchw: [B, 1, 28, 28] float32."""
    t1, t2, wf1, wf2, wf3 = prepped
    B = x_nchw.shape[0]
    x = x_nchw.astype(jnp.float32).reshape(B, 28, 28)

    out = pl.pallas_call(
        mnist_kernel,
        out_shape=jax.ShapeDtypeStruct((B, 8, 128), jnp.float32),
        grid=(B,),
        in_specs=[
            pl.BlockSpec((1, 28, 28), lambda b: (b, 0, 0)),
            pl.BlockSpec(t1.shape, lambda b: (0, 0)),
            pl.BlockSpec(t2.shape, lambda b: (0, 0)),
            pl.BlockSpec(wf1.shape, lambda b: (0, 0)),
            pl.BlockSpec(wf2.shape, lambda b: (0, 0)),
            pl.BlockSpec(wf3.shape, lambda b: (0, 0)),
        ],
        out_specs=pl.BlockSpec((1, 8, 128), lambda b: (b, 0, 0)),
        compiler_params=pltpu.CompilerParams(
            dimension_semantics=("parallel",)),
    )(x, t1, t2, wf1, wf2, wf3)
    return out[:, 0, :10]


# -----------------------------------------------------------------------------
# Deterministic synthetic parameters (PyTorch-native shapes: OIHW, [out, in])
# -----------------------------------------------------------------------------
def init_params(key):
    ks = jax.random.split(key, 10)

    def rn(k, shape, scale):
        return scale * jax.random.normal(k, shape, jnp.float32)

    c1w = rn(ks[0], (6, 1, 5, 5), 0.20);   c1b = rn(ks[1], (6,), 0.10)
    c2w = rn(ks[2], (16, 6, 5, 5), 0.10);  c2b = rn(ks[3], (16,), 0.10)
    f1w = rn(ks[4], (120, 256), 0.05);     f1b = rn(ks[5], (120,), 0.05)
    f2w = rn(ks[6], (84, 120), 0.05);      f2b = rn(ks[7], (84,), 0.05)
    f3w = rn(ks[8], (10, 84), 0.05);       f3b = rn(ks[9], (10,), 0.05)
    return (c1w, c1b, c2w, c2b, f1w, f1b, f2w, f2b, f3w, f3b)


# -----------------------------------------------------------------------------
# Pure-JAX reference (mirrors the PyTorch forward semantics, f32)
# -----------------------------------------------------------------------------
def reference_forward(x_nchw, params):
    (c1w, c1b, c2w, c2b, f1w, f1b, f2w, f2b, f3w, f3b) = params
    B = x_nchw.shape[0]
    dn = ("NCHW", "OIHW", "NCHW")
    y = lax.conv_general_dilated(x_nchw, c1w, (1, 1), "VALID", dimension_numbers=dn)
    y = jnp.maximum(y + c1b.reshape(1, 6, 1, 1), 0.0)
    y = lax.reduce_window(y, -jnp.inf, lax.max, (1, 1, 2, 2), (1, 1, 2, 2), "VALID")
    y = lax.conv_general_dilated(y, c2w, (1, 1), "VALID", dimension_numbers=dn)
    y = jnp.maximum(y + c2b.reshape(1, 16, 1, 1), 0.0)
    y = lax.reduce_window(y, -jnp.inf, lax.max, (1, 1, 2, 2), (1, 1, 2, 2), "VALID")
    flat = y.reshape(B, 256)
    h1 = jnp.maximum(flat @ f1w.T + f1b, 0.0)
    h2 = jnp.maximum(h1 @ f2w.T + f2b, 0.0)
    logits = h2 @ f3w.T + f3b
    return jax.nn.softmax(logits, axis=-1)


if __name__ == "__main__":
    key = jax.random.PRNGKey(0)
    k_x, k_p = jax.random.split(key)
    batch = 2
    # MNISTNet's fc1(256) implies a 28x28 single-channel input.
    x = jax.random.normal(k_x, (batch, 1, 28, 28), jnp.float32)
    params = init_params(k_p)

    prepped = prepare_params(params)          # one-time weight folding (not per-call)
    fwd = jax.jit(mnist_net_forward)
    out = jax.block_until_ready(fwd(x, prepped))
    ref = jax.block_until_ready(reference_forward(x, params))

    assert out.shape == (batch, 10)
    # bf16 MXU operands -> looser tolerance than the f32 reference.
    np.testing.assert_allclose(np.asarray(out), np.asarray(ref), rtol=2e-2, atol=2e-2)
    # rows of a softmax sum to ~1 (approx reciprocal => loose atol)
    np.testing.assert_allclose(np.asarray(out).sum(axis=-1), np.ones(batch), atol=5e-3)

    print("KERNEL_OK")
</pallas_src>

<mosaic_0001>
module attributes {stable_mosaic.version = 11 : i64} {
  func.func @mnist_kernel(%arg0: i32, %arg1: memref<1x28x28xf32, #tpu.memory_space<vmem>>, %arg2: memref<141x144xbf16, #tpu.memory_space<vmem>>, %arg3: memref<361x128xbf16, #tpu.memory_space<vmem>>, %arg4: memref<257x120xbf16, #tpu.memory_space<vmem>>, %arg5: memref<121x84xbf16, #tpu.memory_space<vmem>>, %arg6: memref<85x128xbf16, #tpu.memory_space<vmem>>, %arg7: memref<1x8x128xf32, #tpu.memory_space<vmem>>) attributes {dimension_semantics = [#tpu.dimension_semantics<parallel>], iteration_bounds = array<i64: 2>, scalar_prefetch = 0 : i64, scratch_operands = 0 : i64, tpu.core_type = #tpu.core_type<tc>, window_params = [{transform_indices = @transform_0, window_bounds = array<i64: 1, 28, 28>}, {pipeline_mode = #tpu.pipeline_mode<synchronous>, transform_indices = @transform_1, window_bounds = array<i64: 141, 144>}, {pipeline_mode = #tpu.pipeline_mode<synchronous>, transform_indices = @transform_2, window_bounds = array<i64: 361, 128>}, {pipeline_mode = #tpu.pipeline_mode<synchronous>, transform_indices = @transform_3, window_bounds = array<i64: 257, 120>}, {pipeline_mode = #tpu.pipeline_mode<synchronous>, transform_indices = @transform_4, window_bounds = array<i64: 121, 84>}, {pipeline_mode = #tpu.pipeline_mode<synchronous>, transform_indices = @transform_5, window_bounds = array<i64: 85, 128>}, {transform_indices = @transform_6, window_bounds = array<i64: 1, 8, 128>}]} {
    %c0 = arith.constant 0 : index
    %c0_0 = arith.constant 0 : index
    %c0_1 = arith.constant 0 : index
    %0 = vector.load %arg1[%c0, %c0_0, %c0_1] : memref<1x28x28xf32, #tpu.memory_space<vmem>>, vector<1x28x28xf32>
    %1 = vector.shape_cast %0 : vector<1x28x28xf32> to vector<28x28xf32>
    %cst = arith.constant 1.000000e+00 : f32
    %2 = vector.broadcast %cst : f32 to vector<24x1xf32>
    %3 = vector.extract_strided_slice %1 {offsets = [0, 0], sizes = [24, 28], strides = [1, 1]} : vector<28x28xf32> to vector<24x28xf32>
    %4 = vector.extract_strided_slice %1 {offsets = [1, 0], sizes = [24, 28], strides = [1, 1]} : vector<28x28xf32> to vector<24x28xf32>
    %5 = vector.extract_strided_slice %1 {offsets = [2, 0], sizes = [24, 28], strides = [1, 1]} : vector<28x28xf32> to vector<24x28xf32>
    %6 = vector.extract_strided_slice %1 {offsets = [3, 0], sizes = [24, 28], strides = [1, 1]} : vector<28x28xf32> to vector<24x28xf32>
    %7 = vector.extract_strided_slice %1 {offsets = [4, 0], sizes = [24, 28], strides = [1, 1]} : vector<28x28xf32> to vector<24x28xf32>
    %8 = tpu.concatenate %3, %4, %5, %6, %7, %2 in 1 : vector<24x28xf32>, vector<24x28xf32>, vector<24x28xf32>, vector<24x28xf32>, vector<24x28xf32>, vector<24x1xf32> -> vector<24x141xf32>
    %c0_2 = arith.constant 0 : index
    %c0_3 = arith.constant 0 : index
    %9 = vector.load %arg2[%c0_2, %c0_3] : memref<141x144xbf16, #tpu.memory_space<vmem>>, vector<141x144xbf16>
    %10 = arith.truncf %8 : vector<24x141xf32> to vector<24x141xbf16>
    %cst_4 = arith.constant dense<0.000000e+00> : vector<24x144xf32>
    %11 = tpu.matmul %10, %9, %cst_4 {dimension_numbers = #tpu.dot_dimension_numbers<[1], [0], [0], [1], [0, 0, 1, 1], [], []>} : vector<24x141xbf16>, vector<141x144xbf16>, vector<24x144xf32> -> vector<24x144xf32>
    %cst_5 = arith.constant 0.000000e+00 : f32
    %12 = vector.broadcast %cst_5 : f32 to vector<24x144xf32>
    %13 = arith.maximumf %11, %12 : vector<24x144xf32>
    %14 = vector.extract_strided_slice %13 {offsets = [0, 0], sizes = [24, 72], strides = [1, 1]} : vector<24x144xf32> to vector<24x72xf32>
    %15 = vector.extract_strided_slice %13 {offsets = [0, 72], sizes = [24, 72], strides = [1, 1]} : vector<24x144xf32> to vector<24x72xf32>
    %16 = arith.maximumf %14, %15 : vector<24x72xf32>
    %17 = tpu.iota {dimensions = array<i32: 0>} : vector<12x24xi32>
    %18 = tpu.iota {dimensions = array<i32: 1>} : vector<12x24xi32>
    %c2_i32 = arith.constant 2 : i32
    %19 = vector.broadcast %c2_i32 : i32 to vector<12x24xi32>
    %20 = arith.muli %19, %17 : vector<12x24xi32>
    %21 = arith.cmpi eq, %18, %20 : vector<12x24xi32>
    %22 = arith.extui %21 : vector<12x24xi1> to vector<12x24xi32>
    %23 = arith.sitofp %22 : vector<12x24xi32> to vector<12x24xf32>
    %c2_i32_6 = arith.constant 2 : i32
    %24 = vector.broadcast %c2_i32_6 : i32 to vector<12x24xi32>
    %25 = arith.muli %24, %17 : vector<12x24xi32>
    %c1_i32 = arith.constant 1 : i32
    %26 = vector.broadcast %c1_i32 : i32 to vector<12x24xi32>
    %27 = arith.addi %25, %26 : vector<12x24xi32>
    %28 = arith.cmpi eq, %18, %27 : vector<12x24xi32>
    %29 = arith.extui %28 : vector<12x24xi1> to vector<12x24xi32>
    %30 = arith.sitofp %29 : vector<12x24xi32> to vector<12x24xf32>
    %31 = arith.truncf %23 : vector<12x24xf32> to vector<12x24xbf16>
    %32 = arith.truncf %16 : vector<24x72xf32> to vector<24x72xbf16>
    %cst_7 = arith.constant dense<0.000000e+00> : vector<12x72xf32>
    %33 = tpu.matmul %31, %32, %cst_7 {dimension_numbers = #tpu.dot_dimension_numbers<[1], [0], [0], [1], [0, 0, 1, 1], [], []>} : vector<12x24xbf16>, vector<24x72xbf16>, vector<12x72xf32> -> vector<12x72xf32>
    %34 = arith.truncf %30 : vector<12x24xf32> to vector<12x24xbf16>
    %35 = arith.truncf %16 : vector<24x72xf32> to vector<24x72xbf16>
    %cst_8 = arith.constant dense<0.000000e+00> : vector<12x72xf32>
    %36 = tpu.matmul %34, %35, %cst_8 {dimension_numbers = #tpu.dot_dimension_numbers<[1], [0], [0], [1], [0, 0, 1, 1], [], []>} : vector<12x24xbf16>, vector<24x72xbf16>, vector<12x72xf32> -> vector<12x72xf32>
    %37 = arith.maximumf %33, %36 : vector<12x72xf32>
    %cst_9 = arith.constant 1.000000e+00 : f32
    %38 = vector.broadcast %cst_9 : f32 to vector<8x1xf32>
    %39 = vector.extract_strided_slice %37 {offsets = [0, 0], sizes = [8, 72], strides = [1, 1]} : vector<12x72xf32> to vector<8x72xf32>
    %40 = vector.extract_strided_slice %37 {offsets = [1, 0], sizes = [8, 72], strides = [1, 1]} : vector<12x72xf32> to vector<8x72xf32>
    %41 = vector.extract_strided_slice %37 {offsets = [2, 0], sizes = [8, 72], strides = [1, 1]} : vector<12x72xf32> to vector<8x72xf32>
    %42 = vector.extract_strided_slice %37 {offsets = [3, 0], sizes = [8, 72], strides = [1, 1]} : vector<12x72xf32> to vector<8x72xf32>
    %43 = vector.extract_strided_slice %37 {offsets = [4, 0], sizes = [8, 72], strides = [1, 1]} : vector<12x72xf32> to vector<8x72xf32>
    %44 = tpu.concatenate %39, %40, %41, %42, %43, %38 in 1 : vector<8x72xf32>, vector<8x72xf32>, vector<8x72xf32>, vector<8x72xf32>, vector<8x72xf32>, vector<8x1xf32> -> vector<8x361xf32>
    %c0_10 = arith.constant 0 : index
    %c0_11 = arith.constant 0 : index
    %45 = vector.load %arg3[%c0_10, %c0_11] : memref<361x128xbf16, #tpu.memory_space<vmem>>, vector<361x128xbf16>
    %46 = arith.truncf %44 : vector<8x361xf32> to vector<8x361xbf16>
    %cst_12 = arith.constant dense<0.000000e+00> : vector<8x128xf32>
    %47 = tpu.matmul %46, %45, %cst_12 {dimension_numbers = #tpu.dot_dimension_numbers<[1], [0], [0], [1], [0, 0, 1, 1], [], []>} : vector<8x361xbf16>, vector<361x128xbf16>, vector<8x128xf32> -> vector<8x128xf32>
    %cst_13 = arith.constant 0.000000e+00 : f32
    %48 = vector.broadcast %cst_13 : f32 to vector<8x128xf32>
    %49 = arith.maximumf %47, %48 : vector<8x128xf32>
    %50 = vector.extract_strided_slice %49 {offsets = [0, 0], sizes = [8, 64], strides = [1, 1]} : vector<8x128xf32> to vector<8x64xf32>
    %51 = vector.extract_strided_slice %49 {offsets = [0, 64], sizes = [8, 64], strides = [1, 1]} : vector<8x128xf32> to vector<8x64xf32>
    %52 = arith.maximumf %50, %51 : vector<8x64xf32>
    %53 = vector.extract_strided_slice %52 {offsets = [0, 0], sizes = [1, 64], strides = [1, 1]} : vector<8x64xf32> to vector<1x64xf32>
    %54 = vector.extract_strided_slice %52 {offsets = [1, 0], sizes = [1, 64], strides = [1, 1]} : vector<8x64xf32> to vector<1x64xf32>
    %55 = arith.maximumf %53, %54 : vector<1x64xf32>
    %56 = vector.extract_strided_slice %52 {offsets = [2, 0], sizes = [1, 64], strides = [1, 1]} : vector<8x64xf32> to vector<1x64xf32>
    %57 = vector.extract_strided_slice %52 {offsets = [3, 0], sizes = [1, 64], strides = [1, 1]} : vector<8x64xf32> to vector<1x64xf32>
    %58 = arith.maximumf %56, %57 : vector<1x64xf32>
    %59 = vector.extract_strided_slice %52 {offsets = [4, 0], sizes = [1, 64], strides = [1, 1]} : vector<8x64xf32> to vector<1x64xf32>
    %60 = vector.extract_strided_slice %52 {offsets = [5, 0], sizes = [1, 64], strides = [1, 1]} : vector<8x64xf32> to vector<1x64xf32>
    %61 = arith.maximumf %59, %60 : vector<1x64xf32>
    %62 = vector.extract_strided_slice %52 {offsets = [6, 0], sizes = [1, 64], strides = [1, 1]} : vector<8x64xf32> to vector<1x64xf32>
    %63 = vector.extract_strided_slice %52 {offsets = [7, 0], sizes = [1, 64], strides = [1, 1]} : vector<8x64xf32> to vector<1x64xf32>
    %64 = arith.maximumf %62, %63 : vector<1x64xf32>
    %cst_14 = arith.constant 1.000000e+00 : f32
    %65 = vector.broadcast %cst_14 : f32 to vector<1x1xf32>
    %66 = tpu.concatenate %55, %58, %61, %64, %65 in 1 : vector<1x64xf32>, vector<1x64xf32>, vector<1x64xf32>, vector<1x64xf32>, vector<1x1xf32> -> vector<1x257xf32>
    %c0_15 = arith.constant 0 : index
    %c0_16 = arith.constant 0 : index
    %67 = vector.load %arg4[%c0_15, %c0_16] : memref<257x120xbf16, #tpu.memory_space<vmem>>, vector<257x120xbf16>
    %68 = arith.truncf %66 : vector<1x257xf32> to vector<1x257xbf16>
    %cst_17 = arith.constant dense<0.000000e+00> : vector<1x120xf32>
    %69 = tpu.matmul %68, %67, %cst_17 {dimension_numbers = #tpu.dot_dimension_numbers<[1], [0], [0], [1], [0, 0, 1, 1], [], []>} : vector<1x257xbf16>, vector<257x120xbf16>, vector<1x120xf32> -> vector<1x120xf32>
    %cst_18 = arith.constant 0.000000e+00 : f32
    %70 = vector.broadcast %cst_18 : f32 to vector<1x120xf32>
    %71 = arith.maximumf %69, %70 : vector<1x120xf32>
    %cst_19 = arith.constant 1.000000e+00 : f32
    %72 = vector.broadcast %cst_19 : f32 to vector<1x1xf32>
    %73 = tpu.concatenate %71, %72 in 1 : vector<1x120xf32>, vector<1x1xf32> -> vector<1x121xf32>
    %c0_20 = arith.constant 0 : index
    %c0_21 = arith.constant 0 : index
    %74 = vector.load %arg5[%c0_20, %c0_21] : memref<121x84xbf16, #tpu.memory_space<vmem>>, vector<121x84xbf16>
    %75 = arith.truncf %73 : vector<1x121xf32> to vector<1x121xbf16>
    %cst_22 = arith.constant dense<0.000000e+00> : vector<1x84xf32>
    %76 = tpu.matmul %75, %74, %cst_22 {dimension_numbers = #tpu.dot_dimension_numbers<[1], [0], [0], [1], [0, 0, 1, 1], [], []>} : vector<1x121xbf16>, vector<121x84xbf16>, vector<1x84xf32> -> vector<1x84xf32>
    %cst_23 = arith.constant 0.000000e+00 : f32
    %77 = vector.broadcast %cst_23 : f32 to vector<1x84xf32>
    %78 = arith.maximumf %76, %77 : vector<1x84xf32>
    %cst_24 = arith.constant 1.000000e+00 : f32
    %79 = vector.broadcast %cst_24 : f32 to vector<1x1xf32>
    %80 = tpu.concatenate %78, %79 in 1 : vector<1x84xf32>, vector<1x1xf32> -> vector<1x85xf32>
    %c0_25 = arith.constant 0 : index
    %c0_26 = arith.constant 0 : index
    %81 = vector.load %arg6[%c0_25, %c0_26] : memref<85x128xbf16, #tpu.memory_space<vmem>>, vector<85x128xbf16>
    %82 = arith.truncf %80 : vector<1x85xf32> to vector<1x85xbf16>
    %cst_27 = arith.constant dense<0.000000e+00> : vector<1x128xf32>
    %83 = tpu.matmul %82, %81, %cst_27 {dimension_numbers = #tpu.dot_dimension_numbers<[1], [0], [0], [1], [0, 0, 1, 1], [], []>} : vector<1x85xbf16>, vector<85x128xbf16>, vector<1x128xf32> -> vector<1x128xf32>
    %cst_28 = arith.constant dense<0xFF800000> : vector<1xf32>
    %84 = vector.multi_reduction <maximumf>, %83, %cst_28 [1] : vector<1x128xf32> to vector<1xf32>
    %85 = vector.shape_cast %84 : vector<1xf32> to vector<1x1xf32>
    %86 = vector.broadcast %85 : vector<1x1xf32> to vector<1x128xf32>
    %87 = arith.subf %83, %86 : vector<1x128xf32>
    %88 = math.exp %87 : vector<1x128xf32>
    %cst_29 = arith.constant dense<0.000000e+00> : vector<1xf32>
    %89 = vector.multi_reduction <add>, %88, %cst_29 [1] : vector<1x128xf32> to vector<1xf32>
    %90 = vector.shape_cast %89 : vector<1xf32> to vector<1x1xf32>
    %91 = tpu.reciprocal %90 {approx = true} : vector<1x1xf32> -> vector<1x1xf32>
    %92 = vector.broadcast %91 : vector<1x1xf32> to vector<1x128xf32>
    %93 = arith.mulf %88, %92 : vector<1x128xf32>
    %94 = vector.shape_cast %93 : vector<1x128xf32> to vector<1x128xf32>
    %95 = vector.broadcast %94 : vector<1x128xf32> to vector<8x128xf32>
    %c0_30 = arith.constant 0 : index
    %c0_31 = arith.constant 0 : index
    %c0_32 = arith.constant 0 : index
    %96 = vector.load %arg7[%c0_30, %c0_31, %c0_32] : memref<1x8x128xf32, #tpu.memory_space<vmem>>, vector<1x8x128xf32>
    %97 = vector.shape_cast %96 : vector<1x8x128xf32> to vector<8x128xf32>
    %98 = vector.shape_cast %95 : vector<8x128xf32> to vector<1x8x128xf32>
    tpu.vector_store %arg7[%c0_30, %c0_31, %c0_32], %98 {strides = array<i32>} : memref<1x8x128xf32, #tpu.memory_space<vmem>>, vector<1x8x128xf32>,
    return
  }
  func.func @transform_0(%arg0: i32) -> (i32, i32, i32) {
    %c0_i32 = arith.constant 0 : i32
    %c0_i32_0 = arith.constant 0 : i32
    %c0_i32_1 = arith.constant 0 : i32
    return %arg0, %c0_i32, %c0_i32_0 : i32, i32, i32
  }
  func.func @transform_1(%arg0: i32) -> (i32, i32) {
    %c0_i32 = arith.constant 0 : i32
    %c0_i32_0 = arith.constant 0 : i32
    %c0_i32_1 = arith.constant 0 : i32
    return %c0_i32, %c0_i32_0 : i32, i32
  }
  func.func @transform_2(%arg0: i32) -> (i32, i32) {
    %c0_i32 = arith.constant 0 : i32
    %c0_i32_0 = arith.constant 0 : i32
    %c0_i32_1 = arith.constant 0 : i32
    return %c0_i32, %c0_i32_0 : i32, i32
  }
  func.func @transform_3(%arg0: i32) -> (i32, i32) {
    %c0_i32 = arith.constant 0 : i32
    %c0_i32_0 = arith.constant 0 : i32
    %c0_i32_1 = arith.constant 0 : i32
    return %c0_i32, %c0_i32_0 : i32, i32
  }
  func.func @transform_4(%arg0: i32) -> (i32, i32) {
    %c0_i32 = arith.constant 0 : i32
    %c0_i32_0 = arith.constant 0 : i32
    %c0_i32_1 = arith.constant 0 : i32
    return %c0_i32, %c0_i32_0 : i32, i32
  }
  func.func @transform_5(%arg0: i32) -> (i32, i32) {
    %c0_i32 = arith.constant 0 : i32
    %c0_i32_0 = arith.constant 0 : i32
    %c0_i32_1 = arith.constant 0 : i32
    return %c0_i32, %c0_i32_0 : i32, i32
  }
  func.func @transform_6(%arg0: i32) -> (i32, i32, i32) {
    %c0_i32 = arith.constant 0 : i32
    %c0_i32_0 = arith.constant 0 : i32
    %c0_i32_1 = arith.constant 0 : i32
    return %arg0, %c0_i32, %c0_i32_0 : i32, i32, i32
  }
}

</mosaic_0001>

<llo_original>
// kernel: mnist_net_forward.1
$region0: #{mnist_net_forward.1}
  #allocation0 [shape = 'u32[]', space=smem, size = 0x4, offset = 0x4, fixed_abs, tag = 'smem constant byte address 0x4 - core index']
  #allocation1 [shape = 'u32[144,128]{1,0:T(1,128)}', space=vmem, size = 0x12000, scoped, tag = 'internal scratch']
  %s0 = inlined_call_operand.vmem [shape: f32[2,28,28], index: 0, kind: input, shape index: {}]
  %s1 = inlined_call_operand.vmem [shape: bf16[141,144], index: 1, kind: input, shape index: {}]
  %s2 = inlined_call_operand.vmem [shape: bf16[361,128], index: 2, kind: input, shape index: {}]
  %s3 = inlined_call_operand.hbm [shape: bf16[257,120], index: 3, kind: input, shape index: {}]
  %s4 = inlined_call_operand.vmem [shape: bf16[121,84], index: 4, kind: input, shape index: {}]
  %s5 = inlined_call_operand.hbm [shape: bf16[85,128], index: 5, kind: input, shape index: {}]
  %s6 = inlined_call_operand.vmem [shape: f32[2,8,128], index: 6, kind: output, shape index: {}]
  %s7 = sld [smem:[#allocation0]]
  $region65: #{mnist_net_forward.1} parent=0
    _
  %s9 = ssub.s32 1, %s7
  %s10 = scalar_select 0, %s9, %s7
  $region1: #{mnist_net_forward.1} parent=0
    #allocation2 [shape = 'u8[67584]{0}', space=vmem, size = 0x10800, scoped, tag = 'input window, operand 3, single buffered']
    #allocation3 [shape = 's32[2]{0}', space=sflag, size = 0x8, scoped, tag = 'scoped memory for mnist_net_forward.1']
    #allocation4 [shape = 'u8[22528]{0}', space=vmem, size = 0x5800, scoped, tag = 'input window, operand 5, single buffered']
    #allocation5 [shape = 's32[1]{0}', space=sflag, size = 0x4, scoped, tag = 'scoped memory for mnist_net_forward.1']
    %11 = vsyncpa [#allocation3], 0
    %12 = vsyncpa [#allocation5], 0
    loop: start=0, step=1, limit=4
    $region2: #{mnist_net_forward.1} parent=1 // loop_pre_header
      _
    $region3: #{mnist_net_forward.1} parent=1 // loop_header
      %s14 = sphi 0, %s18
      %p15 = scmp.ge.s32.totalorder %s14, 4
      %s24 = sphi 0, %s26
      %s27 = sphi 0, %s24
      %s28 = sphi 0, %s27
      %s44 = sphi 0, %s28
      %s48 = sphi 0, %s48
      %s50 = sphi 0, %s48
      %s51 = sphi 0, %s50
      %s65 = sphi 0, %s51
      %s69 = sphi 0, %s69
      %s71 = sphi 0, %s69
      %s72 = sphi 0, %s71
      %s86 = sphi 0, %s72
      %s90 = sphi 0, %s90
      %s92 = sphi 0, %s90
      %s93 = sphi 0, %s92
      %s107 = sphi 0, %s93
      %s111 = sphi 0, %s111
      %s113 = sphi 0, %s111
      %s114 = sphi 0, %s113
      %s128 = sphi 0, %s114
      %s132 = sphi 0, %s132
      %s134 = sphi 0, %s132
      %s135 = sphi 0, %s134
      %s149 = sphi 0, %s135
      %s155 = sphi 0, %s157
      %s158 = sphi 0, %s155
      %s159 = sphi 0, %s158
      %s175 = sphi 0, %s159
    $region4: #{mnist_net_forward.1} parent=1 // loop_header_branch
      %17 = sbr.rel (%p15) target = $region8
    $region5: #{mnist_net_forward.1} parent=1 // loop_body
      %s19 = ssub.s32 %s14, 1
      %s20 = ssub.s32 %s14, 2
      %s21 = sadd.s32 %s14, 1
      %s22 = ssub.s32 %s14, %s21
      %p23 = scmp.eq.s32.totalorder %s22, 0
      %s25 = sadd.s32 %s24, 1
      %s26 = scalar_select %p23, %s24, %s25
      %p29 = pneg %p23
      %p30 = scmp.eq.s32.totalorder %s14, 1
      %p31 = por %p29, %p30
      %p32 = scmp.ne.s32.totalorder %s24, %s27
      %p33 = scmp.eq.s32.totalorder %s14, 0
      %p34 = por %p32, %p33
      %p35 = scmp.ne.s32.totalorder %s24, %s27
      %p36 = scmp.eq.s32.totalorder %s19, 1
      %p37 = por %p35, %p36
      %p38 = scmp.ne.s32.totalorder %s27, %s28
      %p39 = scmp.eq.s32.totalorder %s19, 0
      %p40 = por %p38, %p39
      %p41 = scmp.ne.s32.totalorder %s27, %s28
      %p42 = scmp.eq.s32.totalorder %s20, 1
      %p43 = por %p41, %p42
      %p45 = scmp.ne.s32.totalorder %s28, %s44
      %p46 = scmp.eq.s32.totalorder %s20, 0
      %p47 = por %p45, %p46
      %s49 = sadd.s32 %s48, 1
      %p52 = scmp.eq.s32.totalorder %s14, 1
      %p53 = scmp.ne.s32.totalorder %s48, %s50
      %p54 = scmp.eq.s32.totalorder %s14, 0
      %p55 = por %p53, %p54
      %p56 = scmp.ne.s32.totalorder %s48, %s50
      %p57 = scmp.eq.s32.totalorder %s19, 1
      %p58 = por %p56, %p57
      %p59 = scmp.ne.s32.totalorder %s50, %s51
      %p60 = scmp.eq.s32.totalorder %s19, 0
      %p61 = por %p59, %p60
      %p62 = scmp.ne.s32.totalorder %s50, %s51
      %p63 = scmp.eq.s32.totalorder %s20, 1
      %p64 = por %p62, %p63
      %p66 = scmp.ne.s32.totalorder %s51, %s65
      %p67 = scmp.eq.s32.totalorder %s20, 0
      %p68 = por %p66, %p67
      %s70 = sadd.s32 %s69, 1
      %p73 = scmp.eq.s32.totalorder %s14, 1
      %p74 = scmp.ne.s32.totalorder %s69, %s71
      %p75 = scmp.eq.s32.totalorder %s14, 0
      %p76 = por %p74, %p75
      %p77 = scmp.ne.s32.totalorder %s69, %s71
      %p78 = scmp.eq.s32.totalorder %s19, 1
      %p79 = por %p77, %p78
      %p80 = scmp.ne.s32.totalorder %s71, %s72
      %p81 = scmp.eq.s32.totalorder %s19, 0
      %p82 = por %p80, %p81
      %p83 = scmp.ne.s32.totalorder %s71, %s72
      %p84 = scmp.eq.s32.totalorder %s20, 1
      %p85 = por %p83, %p84
      %p87 = scmp.ne.s32.totalorder %s72, %s86
      %p88 = scmp.eq.s32.totalorder %s20, 0
      %p89 = por %p87, %p88
      %s91 = sadd.s32 %s90, 1
      %p94 = scmp.eq.s32.totalorder %s14, 1
      %p95 = scmp.ne.s32.totalorder %s90, %s92
      %p96 = scmp.eq.s32.totalorder %s14, 0
      %p97 = por %p95, %p96
      %p98 = scmp.ne.s32.totalorder %s90, %s92
      %p99 = scmp.eq.s32.totalorder %s19, 1
      %p100 = por %p98, %p99
      %p101 = scmp.ne.s32.totalorder %s92, %s93
      %p102 = scmp.eq.s32.totalorder %s19, 0
      %p103 = por %p101, %p102
      %p104 = scmp.ne.s32.totalorder %s92, %s93
      %p105 = scmp.eq.s32.totalorder %s20, 1
      %p106 = por %p104, %p105
      %p108 = scmp.ne.s32.totalorder %s93, %s107
      %p109 = scmp.eq.s32.totalorder %s20, 0
      %p110 = por %p108, %p109
      %s112 = sadd.s32 %s111, 1
      %p115 = scmp.eq.s32.totalorder %s14, 1
      %p116 = scmp.ne.s32.totalorder %s111, %s113
      %p117 = scmp.eq.s32.totalorder %s14, 0
      %p118 = por %p116, %p117
      %p119 = scmp.ne.s32.totalorder %s111, %s113
      %p120 = scmp.eq.s32.totalorder %s19, 1
      %p121 = por %p119, %p120
      %p122 = scmp.ne.s32.totalorder %s113, %s114
      %p123 = scmp.eq.s32.totalorder %s19, 0
      %p124 = por %p122, %p123
      %p125 = scmp.ne.s32.totalorder %s113, %s114
      %p126 = scmp.eq.s32.totalorder %s20, 1
      %p127 = por %p125, %p126
      %p129 = scmp.ne.s32.totalorder %s114, %s128
      %p130 = scmp.eq.s32.totalorder %s20, 0
      %p131 = por %p129, %p130
      %s133 = sadd.s32 %s132, 1
      %p136 = scmp.eq.s32.totalorder %s14, 1
      %p137 = scmp.ne.s32.totalorder %s132, %s134
      %p138 = scmp.eq.s32.totalorder %s14, 0
      %p139 = por %p137, %p138
      %p140 = scmp.ne.s32.totalorder %s132, %s134
      %p141 = scmp.eq.s32.totalorder %s19, 1
      %p142 = por %p140, %p141
      %p143 = scmp.ne.s32.totalorder %s134, %s135
      %p144 = scmp.eq.s32.totalorder %s19, 0
      %p145 = por %p143, %p144
      %p146 = scmp.ne.s32.totalorder %s134, %s135
      %p147 = scmp.eq.s32.totalorder %s20, 1
      %p148 = por %p146, %p147
      %p150 = scmp.ne.s32.totalorder %s135, %s149
      %p151 = scmp.eq.s32.totalorder %s20, 0
      %p152 = por %p150, %p151
      %s153 = ssub.s32 %s14, %s21
      %p154 = scmp.eq.s32.totalorder %s153, 0
      %s156 = sadd.s32 %s155, 1
      %s157 = scalar_select %p154, %s155, %s156
      %p160 = pneg %p154
      %p161 = scmp.eq.s32.totalorder %s14, 1
      %p162 = por %p160, %p161
      %p163 = scmp.ne.s32.totalorder %s155, %s158
      %p164 = scmp.eq.s32.totalorder %s14, 0
      %p165 = por %p163, %p164
      %p166 = scmp.ne.s32.totalorder %s155, %s158
      %p167 = scmp.eq.s32.totalorder %s19, 1
      %p168 = por %p166, %p167
      %p169 = scmp.ne.s32.totalorder %s158, %s159
      %p170 = scmp.eq.s32.totalorder %s19, 0
      %p171 = por %p169, %p170
      %p172 = scmp.ne.s32.totalorder %s158, %s159
      %p173 = scmp.eq.s32.totalorder %s20, 1
      %p174 = por %p172, %p173
      %p176 = scmp.ne.s32.totalorder %s159, %s175
      %p177 = scmp.eq.s32.totalorder %s20, 0
      %p178 = por %p176, %p177
      %p179 = scmp.le.s32.totalorder 1, %s14
      %p180 = scmp.lt.s32.totalorder %s14, 3
      %p181 = pnand %p179, %p180
      %p182 = pneg %p181
      // Predicated region
      $region9: #{mnist_net_forward.1} parent=5 // pred_check
        _
      $region10: #{mnist_net_forward.1} parent=5 // pred_check_branch
        %184 = sbr.rel (%p181) target = $region12
      $region11: #{mnist_net_forward.1} parent=5 // pred_region
        %s185 = ssub.s32 %s14, 1
        // Predicated region
        $region13: #{mnist_net_forward.1} parent=11 // pred_check
          %p186 = pneg %p61
        $region14: #{mnist_net_forward.1} parent=11 // pred_check_branch
          %188 = sbr.rel (%p186) target = $region16
        $region15: #{mnist_net_forward.1} parent=11 // pred_region
          _
        $region16: #{mnist_net_forward.1} parent=11 // pred_fallthru
          _
        // Predicated region
        $region17: #{mnist_net_forward.1} parent=11 // pred_check
          %p189 = pneg %p82
        $region18: #{mnist_net_forward.1} parent=11 // pred_check_branch
          %191 = sbr.rel (%p189) target = $region20
        $region19: #{mnist_net_forward.1} parent=11 // pred_region
          _
        $region20: #{mnist_net_forward.1} parent=11 // pred_fallthru
          _
        // Predicated region
        $region21: #{mnist_net_forward.1} parent=11 // pred_check
          %p192 = pneg %p103
        $region22: #{mnist_net_forward.1} parent=11 // pred_check_branch
          %194 = sbr.rel (%p192) target = $region24
        $region23: #{mnist_net_forward.1} parent=11 // pred_region
          %s196 = ssub.s32 2112, 2112
          %197 = vsyncadd [#allocation3], %s196
          %s198 = sshll.u32 [#allocation2], 4
          %s199 = int_to_ptr.vmem [resolvable:$true] %s198
          %204 = dma.hbm_to_vmem [thread:$0]  %s3, 2112, %s199, [#allocation3], 64, 64, 4
        $region24: #{mnist_net_forward.1} parent=11 // pred_fallthru
          _
        // Predicated region
        $region25: #{mnist_net_forward.1} parent=11 // pred_check
          %p205 = pneg %p124
        $region26: #{mnist_net_forward.1} parent=11 // pred_check_branch
          %207 = sbr.rel (%p205) target = $region28
        $region27: #{mnist_net_forward.1} parent=11 // pred_region
          _
        $region28: #{mnist_net_forward.1} parent=11 // pred_fallthru
          _
        // Predicated region
        $region29: #{mnist_net_forward.1} parent=11 // pred_check
          %p208 = pneg %p145
        $region30: #{mnist_net_forward.1} parent=11 // pred_check_branch
          %210 = sbr.rel (%p208) target = $region32
        $region31: #{mnist_net_forward.1} parent=11 // pred_region
          %s212 = ssub.s32 704, 704
          %213 = vsyncadd [#allocation5], %s212
          %s214 = sshll.u32 [#allocation4], 4
          %s215 = int_to_ptr.vmem [resolvable:$true] %s214
          %220 = dma.hbm_to_vmem [thread:$0]  %s5, 704, %s215, [#allocation5], 64, 64, 4
        $region32: #{mnist_net_forward.1} parent=11 // pred_fallthru
          _
      $region12: #{mnist_net_forward.1} parent=5 // pred_fallthru
        _
      %p221 = scmp.lt.s32.totalorder %s14, 2
      // Predicated region
      $region33: #{mnist_net_forward.1} parent=5 // pred_check
        %p222 = pneg %p221
      $region34: #{mnist_net_forward.1} parent=5 // pred_check_branch
        %224 = sbr.rel (%p222) target = $region36
      $region35: #{mnist_net_forward.1} parent=5 // pred_region
        // Predicated region
        $region37: #{mnist_net_forward.1} parent=35 // pred_check
          %p225 = pneg %p34
        $region38: #{mnist_net_forward.1} parent=35 // pred_check_branch
          %227 = sbr.rel (%p225) target = $region40
        $region39: #{mnist_net_forward.1} parent=35 // pred_region
          %p228 = scmp.lt.s32.totalorder %s14, 1
          %s229 = scalar_select %p228, %s14, 1
          %s230 = smul.addr %s229, 4
          %s231 = smul.addr %s230, 8
          %s232 = scalar_lea.vmem %s0, %s231
        $region40: #{mnist_net_forward.1} parent=35 // pred_fallthru
          _
      $region36: #{mnist_net_forward.1} parent=5 // pred_fallthru
        _
      %p233 = scmp.le.s32.totalorder 1, %s14
      %p234 = scmp.lt.s32.totalorder %s14, 3
      %p235 = pnand %p233, %p234
      %p236 = pneg %p235
      // Predicated region
      $region41: #{mnist_net_forward.1} parent=5 // pred_check
        _
      $region42: #{mnist_net_forward.1} parent=5 // pred_check_branch
        %238 = sbr.rel (%p235) target = $region44
      $region43: #{mnist_net_forward.1} parent=5 // pred_region
        %s239 = ssub.s32 %s14, 1
        // Predicated region
        $region45: #{mnist_net_forward.1} parent=43 // pred_check
          %p240 = pneg %p103
        $region46: #{mnist_net_forward.1} parent=43 // pred_check_branch
          %242 = sbr.rel (%p240) target = $region48
        $region47: #{mnist_net_forward.1} parent=43 // pred_region
          %243 = dma.done [#allocation3], 2112
        $region48: #{mnist_net_forward.1} parent=43 // pred_fallthru
          _
        // Predicated region
        $region49: #{mnist_net_forward.1} parent=43 // pred_check
          %p244 = pneg %p145
        $region50: #{mnist_net_forward.1} parent=43 // pred_check_branch
          %246 = sbr.rel (%p244) target = $region52
        $region51: #{mnist_net_forward.1} parent=43 // pred_region
          %247 = dma.done [#allocation5], 704
        $region52: #{mnist_net_forward.1} parent=43 // pred_fallthru
          _
        %p248 = scmp.lt.s32.totalorder %s19, 1
        %s249 = scalar_select %p248, %s19, 1
        %s250 = smul.addr %s249, 4
        %s251 = smul.addr %s250, 8
        %s252 = scalar_lea.vmem %s0, %s251
        %p253 = pneg %p40
        %p254 = pneg %p37
        %p255 = pneg %p61
        %p256 = pneg %p58
        %p257 = pneg %p82
        %p258 = pneg %p79
        %p259 = pneg %p103
        %p260 = pneg %p100
        %p261 = pneg %p124
        %p262 = pneg %p121
        %p263 = pneg %p145
        %p264 = pneg %p142
        %p265 = pneg %p171
        %p266 = pneg %p168
        %p267 = scmp.lt.s32.totalorder %s19, 1
        %s268 = scalar_select %p267, %s19, 1
        %s269 = smul.addr %s268, 8
        %s270 = scalar_lea.vmem %s6, %s269
        %p271 = scmp.lt.s32.totalorder %s19, 1
        %s272 = scalar_select %p271, %s19, 1
        %s273 = smul.addr %s272, 4
        %s274 = smul.addr %s273, 8
        %s275 = scalar_lea.vmem %s0, %s274
        %p276 = scmp.lt.s32.totalorder %s19, 1
        %s277 = scalar_select %p276, %s19, 1
        %s278 = smul.addr %s277, 8
        %s279 = scalar_lea.vmem %s6, %s278
        %v281 = vld [vmem:[%s275] sm:$0xff]
        %v282 = vld [vmem:[%s275 + $0x8] sm:$0xff]
        %v283 = vld [vmem:[%s275 + $0x10] sm:$0xff]
        %v284 = vld [vmem:[%s275 + $0x18] sm:$0xf]
        %vm289 = vcmask 1046528
        %v290 = vrot.slane %v281, 1
        %v291 = vrot.slane %v282, 1
        %v292 = vsel %vm289, %v290, %v291
        %v293 = vrot.slane %v283, 1
        %v294 = vsel %vm289, %v291, %v293
        %v295 = vrot.slane %v284, 1
        %v296 = vsel %vm289, %v293, %v295
        %297 = vrot.lane.b32.xlu0 %v292, 28
        %v298 = vpop.permute.xlu0 %297
        %299 = vrot.lane.b32.xlu0 %v294, 28
        %v300 = vpop.permute.xlu0 %299
        %301 = vrot.lane.b32.xlu0 %v296, 28
        %v302 = vpop.permute.xlu0 %301
        %vm306 = vcmask 1045504
        %v307 = vrot.slane %v281, 2
        %v308 = vrot.slane %v282, 2
        %v309 = vsel %vm306, %v307, %v308
        %v310 = vrot.slane %v283, 2
        %v311 = vsel %vm306, %v308, %v310
        %v312 = vrot.slane %v284, 2
        %v313 = vsel %vm306, %v310, %v312
        %314 = vrot.lane.b32.xlu0 %v309, 56
        %v315 = vpop.permute.xlu0 %314
        %316 = vrot.lane.b32.xlu0 %v311, 56
        %v317 = vpop.permute.xlu0 %316
        %318 = vrot.lane.b32.xlu0 %v313, 56
        %v319 = vpop.permute.xlu0 %318
        %vm323 = vcmask 1044480
        %v324 = vrot.slane %v281, 3
        %v325 = vrot.slane %v282, 3
        %v326 = vsel %vm323, %v324, %v325
        %v327 = vrot.slane %v283, 3
        %v328 = vsel %vm323, %v325, %v327
        %v329 = vrot.slane %v284, 3
        %v330 = vsel %vm323, %v327, %v329
        %331 = vrot.lane.b32.xlu0 %v326, 84
        %v332 = vpop.permute.xlu0 %331
        %333 = vrot.lane.b32.xlu0 %v328, 84
        %v334 = vpop.permute.xlu0 %333
        %335 = vrot.lane.b32.xlu0 %v330, 84
        %v336 = vpop.permute.xlu0 %335
        %vm340 = vcmask 1043456
        %v341 = vrot.slane %v281, 4
        %v342 = vrot.slane %v282, 4
        %v343 = vsel %vm340, %v341, %v342
        %v344 = vrot.slane %v283, 4
        %v345 = vsel %vm340, %v342, %v344
        %v346 = vrot.slane %v284, 4
        %v347 = vsel %vm340, %v344, %v346
        %348 = vrot.lane.b32.xlu0 %v343, 112
        %v349 = vpop.permute.xlu0 %348
        %350 = vrot.lane.b32.xlu0 %v345, 112
        %v351 = vpop.permute.xlu0 %350
        %352 = vrot.lane.b32.xlu0 %v347, 112
        %v353 = vpop.permute.xlu0 %352
        %vm357 = vcmask 228352
        %v358 = vsel %vm357, %v281, %v298
        %v359 = vsel %vm357, %v282, %v300
        %v360 = vsel %vm357, %v283, %v302
        %vm361 = vcmask 457728
        %v362 = vsel %vm361, %v358, %v315
        %v363 = vsel %vm361, %v359, %v317
        %v364 = vsel %vm361, %v360, %v319
        %vm365 = vcmask 687104
        %v366 = vsel %vm365, %v362, %v332
        %v367 = vsel %vm365, %v363, %v334
        %v368 = vsel %vm365, %v364, %v336
        %vm369 = vcmask 916480
        %v370 = vsel %vm369, %v366, %v349
        %v371 = vsel %vm369, %v367, %v351
        %v372 = vsel %vm369, %v368, %v353
        %vm373 = vcmask 97280
        %v374 = vsel %vm373, %v349, 1.0
        %v375 = vsel %vm373, %v351, 1.0
        %v376 = vsel %vm373, %v353, 1.0
        %v377 = vld [vmem:[%s1] sm:$0xff]
        %v378 = vld [vmem:[%s1 + $0x8] sm:$0xff]
        %v379 = vld [vmem:[%s1 + $0x10] sm:$0xff]
        %v380 = vld [vmem:[%s1 + $0x18] sm:$0xff]
        %v381 = vld [vmem:[%s1 + $0x20] sm:$0xff]
        %v382 = vld [vmem:[%s1 + $0x28] sm:$0xff]
        %v383 = vld [vmem:[%s1 + $0x30] sm:$0xff]
        %v384 = vld [vmem:[%s1 + $0x38] sm:$0xff]
        %v385 = vld [vmem:[%s1 + $0x40] sm:$0xff]
        %v386 = vld [vmem:[%s1 + $0x48] sm:$0xff]
        %v387 = vld [vmem:[%s1 + $0x50] sm:$0xff]
        %v388 = vld [vmem:[%s1 + $0x58] sm:$0xff]
        %v389 = vld [vmem:[%s1 + $0x60] sm:$0xff]
        %v390 = vld [vmem:[%s1 + $0x68] sm:$0xff]
        %v391 = vld [vmem:[%s1 + $0x70] sm:$0xff]
        %v392 = vld [vmem:[%s1 + $0x78] sm:$0xff]
        %v393 = vld [vmem:[%s1 + $0x80] sm:$0xff]
        %v394 = vld [vmem:[%s1 + $0x88] sm:$0x77]
        %v395 = vpack.c.bf16 %v371, %v370
        %v396 = vpack.c.bf16 %v375, %v374
        %v397 = vpack.c.bf16 %v372, %v372
        %v398 = vpack.c.bf16 %v376, %v376
        %v417 = vunpack.c.l.b16 %v377
        %v418 = vunpack.c.h.b16 %v377
        %v419 = vunpack.c.l.b16 %v378
        %v420 = vunpack.c.h.b16 %v378
        %v421 = vunpack.c.l.b16 %v379
        %v422 = vunpack.c.h.b16 %v379
        %v423 = vunpack.c.l.b16 %v380
        %v424 = vunpack.c.h.b16 %v380
        %v425 = vunpack.c.l.b16 %v381
        %v426 = vunpack.c.h.b16 %v381
        %v427 = vunpack.c.l.b16 %v382
        %v428 = vunpack.c.h.b16 %v382
        %v429 = vunpack.c.l.b16 %v383
        %v430 = vunpack.c.h.b16 %v383
        %v431 = vunpack.c.l.b16 %v384
        %v432 = vunpack.c.h.b16 %v384
        %v433 = vunpack.c.l.b16 %v385
        %v434 = vunpack.c.h.b16 %v385
        %v435 = vunpack.c.l.b16 %v386
        %v436 = vunpack.c.h.b16 %v386
        %v437 = vunpack.c.l.b16 %v387
        %v438 = vunpack.c.h.b16 %v387
        %v439 = vunpack.c.l.b16 %v388
        %v440 = vunpack.c.h.b16 %v388
        %v441 = vunpack.c.l.b16 %v389
        %v442 = vunpack.c.h.b16 %v389
        %v443 = vunpack.c.l.b16 %v390
        %v444 = vunpack.c.h.b16 %v390
        %v445 = vunpack.c.l.b16 %v391
        %v446 = vunpack.c.h.b16 %v391
        %v447 = vunpack.c.l.b16 %v392
        %v448 = vunpack.c.h.b16 %v392
        %v449 = vunpack.c.l.b16 %v393
        %v450 = vunpack.c.h.b16 %v393
        %v451 = vunpack.c.l.b16 %v394
        %v452 = vunpack.c.h.b16 %v394
        %v453 = vpack.c.b16 %v419, %v417
        %v454 = vpack.c.b16 %v420, %v418
        %v455 = vpack.c.b16 %v423, %v421
        %v456 = vpack.c.b16 %v424, %v422
        %v457 = vpack.c.b16 %v427, %v425
        %v458 = vpack.c.b16 %v428, %v426
        %v459 = vpack.c.b16 %v431, %v429
        %v460 = vpack.c.b16 %v432, %v430
        %v461 = vpack.c.b16 %v435, %v433
        %v462 = vpack.c.b16 %v436, %v434
        %v463 = vpack.c.b16 %v439, %v437
        %v464 = vpack.c.b16 %v440, %v438
        %v465 = vpack.c.b16 %v443, %v441
        %v466 = vpack.c.b16 %v444, %v442
        %v467 = vpack.c.b16 %v447, %v445
        %v468 = vpack.c.b16 %v448, %v446
        %v469 = vpack.c.b16 %v451, %v449
        %v470 = vpack.c.b16 %v452, %v450
        %vm487 = vcmask 105472
        %v489 = vsel %vm487, %v396, 0
        %v492 = vsel %vm487, %v398, 0
        %v494 = vsel %vm306, 4294967295, 65535
        %v495 = vsel %vm289, %v494, 0
        %v497 = vand.u32 %v469, %v495
        %v500 = vand.u32 %v470, %v495
        %502 = vmatprep.subr.bf16.mxu0 %v468
        %503 = vmatpush1.bf16.msra.mxu0 %v467
        %504 = vmatprep.subr.bf16.mxu0 %v466
        %505 = vmatpush1.bf16.msra.mxu0 %v465
        %506 = vmatprep.subr.bf16.mxu0 %v464
        %507 = vmatpush1.bf16.msra.mxu0 %v463
        %508 = vmatprep.subr.bf16.mxu0 %v462
        %509 = vmatpush1.bf16.msra.mxu0 %v461
        %510 = vmatprep.subr.bf16.mxu0 %v460
        %511 = vmatpush1.bf16.msra.mxu0 %v459
        %512 = vmatprep.subr.bf16.mxu0 %v458
        %513 = vmatpush1.bf16.msra.mxu0 %v457
        %514 = vmatprep.subr.bf16.mxu0 %v456
        %515 = vmatpush1.bf16.msra.mxu0 %v455
        %516 = vmatprep.subr.bf16.mxu0 %v454
        %517 = vmatpush1.bf16.msra.mxu0 %v453
        %518 = vmatprep.subr.bf16.mxu0 0
        %519 = vmatpush2.bf16.msra.mxu0 0
        %520 = vmatprep.subr.bf16.mxu0 0
        %521 = vmatpush2.bf16.msra.mxu0 0
        %522 = vmatprep.subr.bf16.mxu0 0
        %523 = vmatpush2.bf16.msra.mxu0 0
        %524 = vmatprep.subr.bf16.mxu0 0
        %525 = vmatpush2.bf16.msra.mxu0 0
        %526 = vmatprep.subr.bf16.mxu0 0
        %527 = vmatpush2.bf16.msra.mxu0 0
        %528 = vmatprep.subr.bf16.mxu0 0
        %529 = vmatpush2.bf16.msra.mxu0 0
        %530 = vmatprep.subr.bf16.mxu0 0
        %531 = vmatpush2.bf16.msra.mxu0 0
        %532 = vmatprep.subr.bf16.mxu0 %v500
        %533 = vmatpush2.bf16.msra.mxu0 %v497
        %534 = vmatprep.mubr.bf16.mxu0 %v489
        %535 = vmatmul.mubr.bf16.gmra.mxu0 %v395
        %v536 = vpop.f32.mrf.mxu0
        %v537 = vadd.f32 0.0, %v536
        %v538 = vpop.f32.mrf.mxu0
        %v539 = vadd.f32 0.0, %v538
        %v540 = vpop.f32.mrf.mxu0
        %v541 = vadd.f32 0.0, %v540
        %v542 = vpop.f32.mrf.mxu0
        %v543 = vadd.f32 0.0, %v542
        %544 = vmatprep.mubr.bf16.mxu0 %v492
        %545 = vmatmul.mubr.bf16.gmra.mxu0 %v397
        %v546 = vpop.f32.mrf.mxu0
        %v547 = vadd.f32 0.0, %v546
        %v548 = vpop.f32.mrf.mxu0
        %v549 = vadd.f32 0.0, %v548
        %v550 = vpop.f32.mrf.mxu0
        %v551 = vpop.f32.mrf.mxu0
        %552 = vdwg.mxu0
        %v553 = vmax.f32 %v537, 0.0
        %v554 = vmax.f32 %v539, 0.0
        %v555 = vmax.f32 %v541, 0.0
        %v556 = vmax.f32 %v543, 0.0
        %v557 = vmax.f32 %v547, 0.0
        %v558 = vmax.f32 %v549, 0.0
        %565 = vrot.lane.b32.xlu0 %v553, 56
        %v566 = vpop.permute.xlu0 %565
        %567 = vrot.lane.b32.xlu0 %v554, 56
        %v568 = vpop.permute.xlu0 %567
        %569 = vrot.lane.b32.xlu0 %v555, 56
        %v570 = vpop.permute.xlu0 %569
        %571 = vrot.lane.b32.xlu0 %v556, 56
        %v572 = vpop.permute.xlu0 %571
        %573 = vrot.lane.b32.xlu0 %v557, 56
        %v574 = vpop.permute.xlu0 %573
        %575 = vrot.lane.b32.xlu0 %v558, 56
        %v576 = vpop.permute.xlu0 %575
        %v577 = vsel %vm361, %v566, %v568
        %v578 = vsel %vm361, %v570, %v572
        %v579 = vsel %vm361, %v574, %v576
        %v583 = vmax.f32 %v553, %v577
        %v584 = vmax.f32 %v555, %v578
        %v585 = vmax.f32 %v557, %v579
        %v586 = vlaneseq
        %v587 = vshrl.u32 %v586, 7
        %v588 = vadd.s32 %v587, 8
        %v589 = vlaneseq
        %v590 = vand.u32 %v589, 127
        %v591 = vmul.u32 %v587, 2
        %v592 = vmul.u32 %v588, 2
        %vm593 = vcmp.eq.s32.totalorder %v590, %v591
        %vm594 = vcmp.eq.s32.totalorder %v590, %v592
        %v595 = vadd.s32 %v591, 1
        %v596 = vadd.s32 %v592, 1
        %vm597 = vcmp.eq.s32.totalorder %v590, %v595
        %vm598 = vcmp.eq.s32.totalorder %v590, %v596
        %v599 = vsel %vm593, 1, 0
        %v600 = vsel %vm594, 1, 0
        %v601 = vcvt.s32.f32 %v599
        %v602 = vcvt.s32.f32 %v600
        %v603 = vpack.c.bf16 %v602, %v601
        %v604 = vpack.c.bf16 %v584, %v583
        %v605 = vpack.c.bf16 %v585, %v585
        %vm606 = vcmask 195584
        %v608 = vsel %vm606, %v603, 0
        %v611 = vsel %vm340, %v605, 0
        %613 = vmatprep.subr.bf16.mxu0 0
        %614 = vmatpush1.bf16.msra.mxu0 0
        %615 = vmatprep.subr.bf16.mxu0 0
        %616 = vmatpush1.bf16.msra.mxu0 0
        %617 = vmatprep.subr.bf16.mxu0 0
        %618 = vmatpush1.bf16.msra.mxu0 0
        %619 = vmatprep.subr.bf16.mxu0 0
        %620 = vmatpush1.bf16.msra.mxu0 0
        %621 = vmatprep.subr.bf16.mxu0 0
        %622 = vmatpush1.bf16.msra.mxu0 0
        %623 = vmatprep.subr.bf16.mxu0 0
        %624 = vmatpush1.bf16.msra.mxu0 0
        %625 = vmatprep.subr.bf16.mxu0 0
        %626 = vmatpush1.bf16.msra.mxu0 %v611
        %627 = vmatprep.subr.bf16.mxu0 0
        %628 = vmatpush1.bf16.msra.mxu0 %v604
        %629 = vmatprep.subr.bf16.mxu0 0
        %630 = vmatpush2.bf16.msra.mxu0 0
        %631 = vmatprep.subr.bf16.mxu0 0
        %632 = vmatpush2.bf16.msra.mxu0 0
        %633 = vmatprep.subr.bf16.mxu0 0
        %634 = vmatpush2.bf16.msra.mxu0 0
        %635 = vmatprep.subr.bf16.mxu0 0
        %636 = vmatpush2.bf16.msra.mxu0 0
        %637 = vmatprep.subr.bf16.mxu0 0
        %638 = vmatpush2.bf16.msra.mxu0 0
        %639 = vmatprep.subr.bf16.mxu0 0
        %640 = vmatpush2.bf16.msra.mxu0 0
        %641 = vmatprep.subr.bf16.mxu0 0
        %642 = vmatpush2.bf16.msra.mxu0 0
        %643 = vmatprep.subr.bf16.mxu0 0
        %644 = vmatpush2.bf16.msra.mxu0 0
        %645 = vmatprep.mubr.bf16.mxu0 0
        %646 = vmatmul.mubr.bf16.gmra.mxu0 %v608
        %v647 = vpop.f32.mrf.mxu0
        %v648 = vadd.f32 0.0, %v647
        %v649 = vpop.f32.mrf.mxu0
        %v650 = vpop.f32.mrf.mxu0
        %v651 = vadd.f32 0.0, %v650
        %v652 = vpop.f32.mrf.mxu0
        %653 = vdwg.mxu0
        %v654 = vsel %vm597, 1, 0
        %v655 = vsel %vm598, 1, 0
        %v656 = vcvt.s32.f32 %v654
        %v657 = vcvt.s32.f32 %v655
        %v658 = vpack.c.bf16 %v657, %v656
        %v660 = vsel %vm606, %v658, 0
        %662 = vmatprep.subr.bf16.mxu0 0
        %663 = vmatpush1.bf16.msra.mxu0 0
        %664 = vmatprep.subr.bf16.mxu0 0
        %665 = vmatpush1.bf16.msra.mxu0 0
        %666 = vmatprep.subr.bf16.mxu0 0
        %667 = vmatpush1.bf16.msra.mxu0 0
        %668 = vmatprep.subr.bf16.mxu0 0
        %669 = vmatpush1.bf16.msra.mxu0 0
        %670 = vmatprep.subr.bf16.mxu0 0
        %671 = vmatpush1.bf16.msra.mxu0 0
        %672 = vmatprep.subr.bf16.mxu0 0
        %673 = vmatpush1.bf16.msra.mxu0 0
        %674 = vmatprep.subr.bf16.mxu0 0
        %675 = vmatpush1.bf16.msra.mxu0 %v611
        %676 = vmatprep.subr.bf16.mxu0 0
        %677 = vmatpush1.bf16.msra.mxu0 %v604
        %678 = vmatprep.subr.bf16.mxu0 0
        %679 = vmatpush2.bf16.msra.mxu0 0
        %680 = vmatprep.subr.bf16.mxu0 0
        %681 = vmatpush2.bf16.msra.mxu0 0
        %682 = vmatprep.subr.bf16.mxu0 0
        %683 = vmatpush2.bf16.msra.mxu0 0
        %684 = vmatprep.subr.bf16.mxu0 0
        %685 = vmatpush2.bf16.msra.mxu0 0
        %686 = vmatprep.subr.bf16.mxu0 0
        %687 = vmatpush2.bf16.msra.mxu0 0
        %688 = vmatprep.subr.bf16.mxu0 0
        %689 = vmatpush2.bf16.msra.mxu0 0
        %690 = vmatprep.subr.bf16.mxu0 0
        %691 = vmatpush2.bf16.msra.mxu0 0
        %692 = vmatprep.subr.bf16.mxu0 0
        %693 = vmatpush2.bf16.msra.mxu0 0
        %694 = vmatprep.mubr.bf16.mxu0 0
        %695 = vmatmul.mubr.bf16.gmra.mxu0 %v660
        %v696 = vpop.f32.mrf.mxu0
        %v697 = vadd.f32 0.0, %v696
        %v698 = vpop.f32.mrf.mxu0
        %v699 = vpop.f32.mrf.mxu0
        %v700 = vadd.f32 0.0, %v699
        %v701 = vpop.f32.mrf.mxu0
        %702 = vdwg.mxu0
        %v703 = vmax.f32 %v648, %v697
        %v704 = vmax.f32 %v651, %v700
        %v707 = vrot.slane %v703, 1
        %v708 = vrot.slane %v704, 1
        %v709 = vsel %vm289, %v707, %v708
        %710 = vrot.lane.b32.xlu0 %v709, 72
        %v711 = vpop.permute.xlu0 %710
        %v713 = vrot.slane %v703, 2
        %v714 = vrot.slane %v704, 2
        %v715 = vsel %vm306, %v713, %v714
        %716 = vrot.lane.b32.xlu0 %v715, 16
        %v717 = vpop.permute.xlu0 %716
        %v719 = vrot.slane %v703, 3
        %v720 = vrot.slane %v704, 3
        %v721 = vsel %vm323, %v719, %v720
        %722 = vrot.lane.b32.xlu0 %v721, 88
        %v723 = vpop.permute.xlu0 %722
        %v725 = vrot.slane %v703, 4
        %v726 = vrot.slane %v704, 4
        %v727 = vsel %vm340, %v725, %v726
        %728 = vrot.lane.b32.xlu0 %v727, 32
        %v729 = vpop.permute.xlu0 %728
        %vm731 = vcmask 588800
        %v732 = vsel %vm731, %v703, %v711
        %vm733 = vcmask 130048
        %v734 = vsel %vm733, %v711, %v717
        %vm735 = vcmask 719872
        %v736 = vsel %vm735, %v734, %v723
        %vm737 = vcmask 261120
        %v738 = vsel %vm737, %v723, %v729
        %vm739 = vcmask 850944
        %v740 = vsel %vm739, %v738, 1.0
        %v741 = vld [vmem:[%s2] sm:$0xf]
        %v742 = vld [vmem:[%s2 + $0x4] sm:$0xf]
        %v743 = vld [vmem:[%s2 + $0x8] sm:$0xf]
        %v744 = vld [vmem:[%s2 + $0xc] sm:$0xf]
        %v745 = vld [vmem:[%s2 + $0x10] sm:$0xf]
        %v746 = vld [vmem:[%s2 + $0x14] sm:$0xf]
        %v747 = vld [vmem:[%s2 + $0x18] sm:$0xf]
        %v748 = vld [vmem:[%s2 + $0x1c] sm:$0xf]
        %v749 = vld [vmem:[%s2 + $0x20] sm:$0xf]
        %v750 = vld [vmem:[%s2 + $0x24] sm:$0xf]
        %v751 = vld [vmem:[%s2 + $0x28] sm:$0xf]
        %v752 = vld [vmem:[%s2 + $0x2c] sm:$0xf]
        %v753 = vld [vmem:[%s2 + $0x30] sm:$0xf]
        %v754 = vld [vmem:[%s2 + $0x34] sm:$0xf]
        %v755 = vld [vmem:[%s2 + $0x38] sm:$0xf]
        %v756 = vld [vmem:[%s2 + $0x3c] sm:$0xf]
        %v757 = vld [vmem:[%s2 + $0x40] sm:$0xf]
        %v758 = vld [vmem:[%s2 + $0x44] sm:$0xf]
        %v759 = vld [vmem:[%s2 + $0x48] sm:$0xf]
        %v760 = vld [vmem:[%s2 + $0x4c] sm:$0xf]
        %v761 = vld [vmem:[%s2 + $0x50] sm:$0xf]
        %v762 = vld [vmem:[%s2 + $0x54] sm:$0xf]
        %v763 = vld [vmem:[%s2 + $0x58] sm:$0xf]
        %v764 = vld [vmem:[%s2 + $0x5c] sm:$0xf]
        %v765 = vld [vmem:[%s2 + $0x60] sm:$0xf]
        %v766 = vld [vmem:[%s2 + $0x64] sm:$0xf]
        %v767 = vld [vmem:[%s2 + $0x68] sm:$0xf]
        %v768 = vld [vmem:[%s2 + $0x6c] sm:$0xf]
        %v769 = vld [vmem:[%s2 + $0x70] sm:$0xf]
        %v770 = vld [vmem:[%s2 + $0x74] sm:$0xf]
        %v771 = vld [vmem:[%s2 + $0x78] sm:$0xf]
        %v772 = vld [vmem:[%s2 + $0x7c] sm:$0xf]
        %v773 = vld [vmem:[%s2 + $0x80] sm:$0xf]
        %v774 = vld [vmem:[%s2 + $0x84] sm:$0xf]
        %v775 = vld [vmem:[%s2 + $0x88] sm:$0xf]
        %v776 = vld [vmem:[%s2 + $0x8c] sm:$0xf]
        %v777 = vld [vmem:[%s2 + $0x90] sm:$0xf]
        %v778 = vld [vmem:[%s2 + $0x94] sm:$0xf]
        %v779 = vld [vmem:[%s2 + $0x98] sm:$0xf]
        %v780 = vld [vmem:[%s2 + $0x9c] sm:$0xf]
        %v781 = vld [vmem:[%s2 + $0xa0] sm:$0xf]
        %v782 = vld [vmem:[%s2 + $0xa4] sm:$0xf]
        %v783 = vld [vmem:[%s2 + $0xa8] sm:$0xf]
        %v784 = vld [vmem:[%s2 + $0xac] sm:$0xf]
        %v785 = vld [vmem:[%s2 + $0xb0] sm:$0xf]
        %v786 = vld [vmem:[%s2 + $0xb4] sm:$0x1]
        %v787 = vpack.c.bf16 %v732, %v732
        %v788 = vpack.c.bf16 %v736, %v736
        %v789 = vpack.c.bf16 %v740, %v740
        %v836 = vunpack.c.l.b16 %v741
        %v837 = vunpack.c.l.b16 %v742
        %v838 = vunpack.c.l.b16 %v743
        %v839 = vunpack.c.l.b16 %v744
        %v840 = vunpack.c.l.b16 %v745
        %v841 = vunpack.c.l.b16 %v746
        %v842 = vunpack.c.l.b16 %v747
        %v843 = vunpack.c.l.b16 %v748
        %v844 = vunpack.c.l.b16 %v749
        %v845 = vunpack.c.l.b16 %v750
        %v846 = vunpack.c.l.b16 %v751
        %v847 = vunpack.c.l.b16 %v752
        %v848 = vunpack.c.l.b16 %v753
        %v849 = vunpack.c.l.b16 %v754
        %v850 = vunpack.c.l.b16 %v755
        %v851 = vunpack.c.l.b16 %v756
        %v852 = vunpack.c.l.b16 %v757
        %v853 = vunpack.c.l.b16 %v758
        %v854 = vunpack.c.l.b16 %v759
        %v855 = vunpack.c.l.b16 %v760
        %v856 = vunpack.c.l.b16 %v761
        %v857 = vunpack.c.l.b16 %v762
        %v858 = vunpack.c.l.b16 %v763
        %v859 = vunpack.c.l.b16 %v764
        %v860 = vunpack.c.l.b16 %v765
        %v861 = vunpack.c.l.b16 %v766
        %v862 = vunpack.c.l.b16 %v767
        %v863 = vunpack.c.l.b16 %v768
        %v864 = vunpack.c.l.b16 %v769
        %v865 = vunpack.c.l.b16 %v770
        %v866 = vunpack.c.l.b16 %v771
        %v867 = vunpack.c.l.b16 %v772
        %v868 = vunpack.c.l.b16 %v773
        %v869 = vunpack.c.l.b16 %v774
        %v870 = vunpack.c.l.b16 %v775
        %v871 = vunpack.c.l.b16 %v776
        %v872 = vunpack.c.l.b16 %v777
        %v873 = vunpack.c.l.b16 %v778
        %v874 = vunpack.c.l.b16 %v779
        %v875 = vunpack.c.l.b16 %v780
        %v876 = vunpack.c.l.b16 %v781
        %v877 = vunpack.c.l.b16 %v782
        %v878 = vunpack.c.l.b16 %v783
        %v879 = vunpack.c.l.b16 %v784
        %v880 = vunpack.c.l.b16 %v785
        %v881 = vunpack.c.l.b16 %v786
        %v882 = vpack.c.b16 %v837, %v836
        %v883 = vpack.c.b16 %v839, %v838
        %v884 = vpack.c.b16 %v841, %v840
        %v885 = vpack.c.b16 %v843, %v842
        %v886 = vpack.c.b16 %v845, %v844
        %v887 = vpack.c.b16 %v847, %v846
        %v888 = vpack.c.b16 %v849, %v848
        %v889 = vpack.c.b16 %v851, %v850
        %v890 = vpack.c.b16 %v853, %v852
        %v891 = vpack.c.b16 %v855, %v854
        %v892 = vpack.c.b16 %v857, %v856
        %v893 = vpack.c.b16 %v859, %v858
        %v894 = vpack.c.b16 %v861, %v860
        %v895 = vpack.c.b16 %v863, %v862
        %v896 = vpack.c.b16 %v865, %v864
        %v897 = vpack.c.b16 %v867, %v866
        %v898 = vpack.c.b16 %v869, %v868
        %v899 = vpack.c.b16 %v871, %v870
        %v900 = vpack.c.b16 %v873, %v872
        %v901 = vpack.c.b16 %v875, %v874
        %v902 = vpack.c.b16 %v877, %v876
        %v903 = vpack.c.b16 %v879, %v878
        %v904 = vpack.c.b16 %v881, %v880
        %vm927 = vcmask 859136
        %v929 = vsel %vm927, %v789, 0
        %v931 = vsel %vm340, 4294967295, 65535
        %v932 = vsel %vm323, %v931, 0
        %v934 = vand.u32 %v904, %v932
        %936 = vmatprep.subr.bf16.mxu0 0
        %937 = vmatpush1.bf16.msra.mxu0 %v889
        %938 = vmatprep.subr.bf16.mxu0 0
        %939 = vmatpush1.bf16.msra.mxu0 %v888
        %940 = vmatprep.subr.bf16.mxu0 0
        %941 = vmatpush1.bf16.msra.mxu0 %v887
        %942 = vmatprep.subr.bf16.mxu0 0
        %943 = vmatpush1.bf16.msra.mxu0 %v886
        %944 = vmatprep.subr.bf16.mxu0 0
        %945 = vmatpush1.bf16.msra.mxu0 %v885
        %946 = vmatprep.subr.bf16.mxu0 0
        %947 = vmatpush1.bf16.msra.mxu0 %v884
        %948 = vmatprep.subr.bf16.mxu0 0
        %949 = vmatpush1.bf16.msra.mxu0 %v883
        %950 = vmatprep.subr.bf16.mxu0 0
        %951 = vmatpush1.bf16.msra.mxu0 %v882
        %952 = vmatprep.subr.bf16.mxu0 0
        %953 = vmatpush2.bf16.msra.mxu0 %v897
        %954 = vmatprep.subr.bf16.mxu0 0
        %955 = vmatpush2.bf16.msra.mxu0 %v896
        %956 = vmatprep.subr.bf16.mxu0 0
        %957 = vmatpush2.bf16.msra.mxu0 %v895
        %958 = vmatprep.subr.bf16.mxu0 0
        %959 = vmatpush2.bf16.msra.mxu0 %v894
        %960 = vmatprep.subr.bf16.mxu0 0
        %961 = vmatpush2.bf16.msra.mxu0 %v893
        %962 = vmatprep.subr.bf16.mxu0 0
        %963 = vmatpush2.bf16.msra.mxu0 %v892
        %964 = vmatprep.subr.bf16.mxu0 0
        %965 = vmatpush2.bf16.msra.mxu0 %v891
        %966 = vmatprep.subr.bf16.mxu0 0
        %967 = vmatpush2.bf16.msra.mxu0 %v890
        %968 = vmatprep.mubr.bf16.mxu0 %v788
        %969 = vmatmul.mubr.bf16.gmra.mxu0 %v787
        %v970 = vpop.f32.mrf.mxu0
        %v971 = vadd.f32 0.0, %v970
        %v972 = vpop.f32.mrf.mxu0
        %v973 = vpop.f32.mrf.mxu0
        %v974 = vpop.f32.mrf.mxu0
        %975 = vdwg.mxu0
        %976 = vmatprep.subr.bf16.mxu0 0
        %977 = vmatpush1.bf16.msra.mxu0 0
        %978 = vmatprep.subr.bf16.mxu0 0
        %979 = vmatpush1.bf16.msra.mxu0 %v934
        %980 = vmatprep.subr.bf16.mxu0 0
        %981 = vmatpush1.bf16.msra.mxu0 %v903
        %982 = vmatprep.subr.bf16.mxu0 0
        %983 = vmatpush1.bf16.msra.mxu0 %v902
        %984 = vmatprep.subr.bf16.mxu0 0
        %985 = vmatpush1.bf16.msra.mxu0 %v901
        %986 = vmatprep.subr.bf16.mxu0 0
        %987 = vmatpush1.bf16.msra.mxu0 %v900
        %988 = vmatprep.subr.bf16.mxu0 0
        %989 = vmatpush1.bf16.msra.mxu0 %v899
        %990 = vmatprep.subr.bf16.mxu0 0
        %991 = vmatpush1.bf16.msra.mxu0 %v898
        %992 = vmatprep.subr.bf16.mxu0 0
        %993 = vmatpush2.bf16.msra.mxu0 0
        %994 = vmatprep.subr.bf16.mxu0 0
        %995 = vmatpush2.bf16.msra.mxu0 0
        %996 = vmatprep.subr.bf16.mxu0 0
        %997 = vmatpush2.bf16.msra.mxu0 0
        %998 = vmatprep.subr.bf16.mxu0 0
        %999 = vmatpush2.bf16.msra.mxu0 0
        %1000 = vmatprep.subr.bf16.mxu0 0
        %1001 = vmatpush2.bf16.msra.mxu0 0
        %1002 = vmatprep.subr.bf16.mxu0 0
        %1003 = vmatpush2.bf16.msra.mxu0 0
        %1004 = vmatprep.subr.bf16.mxu0 0
        %1005 = vmatpush2.bf16.msra.mxu0 0
        %1006 = vmatprep.subr.bf16.mxu0 0
        %1007 = vmatpush2.bf16.msra.mxu0 0
        %1008 = vmatprep.mubr.bf16.mxu0 0
        %1009 = vmatmul.mubr.bf16.gmra.mxu0 %v929
        %v1010 = vpop.f32.mrf.mxu0
        %v1011 = vadd.f32 %v971, %v1010
        %v1012 = vpop.f32.mrf.mxu0
        %v1013 = vpop.f32.mrf.mxu0
        %v1014 = vpop.f32.mrf.mxu0
        %1015 = vdwg.mxu0
        %v1016 = vmax.f32 %v1011, 0.0
        %1018 = vrot.lane.b32.xlu0 %v1016, 64
        %v1019 = vpop.permute.xlu0 %1018
        %v1021 = vmax.f32 %v1016, %v1019
        %v1023 = vrot.slane %v1021, 1
        %v1025 = vmax.f32 %v1021, %v1023
        %v1027 = vrot.slane %v1025, 2
        %1028 = vrot.lane.b32.xlu0 %v1027, 64
        %v1029 = vpop.permute.xlu0 %1028
        %v1031 = vrot.slane %v1025, 4
        %v1033 = vrot.slane %v1025, 6
        %1034 = vrot.lane.b32.xlu0 %v1033, 64
        %v1035 = vpop.permute.xlu0 %1034
        %vm1037 = vcmask 523264
        %v1038 = vsel %vm1037, %v1025, %v1029
        %v1039 = vsel %vm1037, %v1031, %v1035
        %v1040 = vld [vmem:[#allocation2] sm:$0xf]
        %v1041 = vld [vmem:[#allocation2 + $0x4] sm:$0xf]
        %v1042 = vld [vmem:[#allocation2 + $0x8] sm:$0xf]
        %v1043 = vld [vmem:[#allocation2 + $0xc] sm:$0xf]
        %v1044 = vld [vmem:[#allocation2 + $0x10] sm:$0xf]
        %v1045 = vld [vmem:[#allocation2 + $0x14] sm:$0xf]
        %v1046 = vld [vmem:[#allocation2 + $0x18] sm:$0xf]
        %v1047 = vld [vmem:[#allocation2 + $0x1c] sm:$0xf]
        %v1048 = vld [vmem:[#allocation2 + $0x20] sm:$0xf]
        %v1049 = vld [vmem:[#allocation2 + $0x24] sm:$0xf]
        %v1050 = vld [vmem:[#allocation2 + $0x28] sm:$0xf]
        %v1051 = vld [vmem:[#allocation2 + $0x2c] sm:$0xf]
        %v1052 = vld [vmem:[#allocation2 + $0x30] sm:$0xf]
        %v1053 = vld [vmem:[#allocation2 + $0x34] sm:$0xf]
        %v1054 = vld [vmem:[#allocation2 + $0x38] sm:$0xf]
        %v1055 = vld [vmem:[#allocation2 + $0x3c] sm:$0xf]
        %v1056 = vld [vmem:[#allocation2 + $0x40] sm:$0xf]
        %v1057 = vld [vmem:[#allocation2 + $0x44] sm:$0xf]
        %v1058 = vld [vmem:[#allocation2 + $0x48] sm:$0xf]
        %v1059 = vld [vmem:[#allocation2 + $0x4c] sm:$0xf]
        %v1060 = vld [vmem:[#allocation2 + $0x50] sm:$0xf]
        %v1061 = vld [vmem:[#allocation2 + $0x54] sm:$0xf]
        %v1062 = vld [vmem:[#allocation2 + $0x58] sm:$0xf]
        %v1063 = vld [vmem:[#allocation2 + $0x5c] sm:$0xf]
        %v1064 = vld [vmem:[#allocation2 + $0x60] sm:$0xf]
        %v1065 = vld [vmem:[#allocation2 + $0x64] sm:$0xf]
        %v1066 = vld [vmem:[#allocation2 + $0x68] sm:$0xf]
        %v1067 = vld [vmem:[#allocation2 + $0x6c] sm:$0xf]
        %v1068 = vld [vmem:[#allocation2 + $0x70] sm:$0xf]
        %v1069 = vld [vmem:[#allocation2 + $0x74] sm:$0xf]
        %v1070 = vld [vmem:[#allocation2 + $0x78] sm:$0xf]
        %v1071 = vld [vmem:[#allocation2 + $0x7c] sm:$0xf]
        %v1072 = vld [vmem:[#allocation2 + $0x80] sm:$0x1]
        %v1073 = vpack.c.bf16 %v1038, %v1038
        %v1074 = vpack.c.bf16 %v1039, %v1039
        %v1075 = vpack.c.bf16 1.0, 1.0
        %v1109 = vunpack.c.l.b16 %v1040
        %v1110 = vunpack.c.l.b16 %v1041
        %v1111 = vunpack.c.l.b16 %v1042
        %v1112 = vunpack.c.l.b16 %v1043
        %v1113 = vunpack.c.l.b16 %v1044
        %v1114 = vunpack.c.l.b16 %v1045
        %v1115 = vunpack.c.l.b16 %v1046
        %v1116 = vunpack.c.l.b16 %v1047
        %v1117 = vunpack.c.l.b16 %v1048
        %v1118 = vunpack.c.l.b16 %v1049
        %v1119 = vunpack.c.l.b16 %v1050
        %v1120 = vunpack.c.l.b16 %v1051
        %v1121 = vunpack.c.l.b16 %v1052
        %v1122 = vunpack.c.l.b16 %v1053
        %v1123 = vunpack.c.l.b16 %v1054
        %v1124 = vunpack.c.l.b16 %v1055
        %v1125 = vunpack.c.l.b16 %v1056
        %v1126 = vunpack.c.l.b16 %v1057
        %v1127 = vunpack.c.l.b16 %v1058
        %v1128 = vunpack.c.l.b16 %v1059
        %v1129 = vunpack.c.l.b16 %v1060
        %v1130 = vunpack.c.l.b16 %v1061
        %v1131 = vunpack.c.l.b16 %v1062
        %v1132 = vunpack.c.l.b16 %v1063
        %v1133 = vunpack.c.l.b16 %v1064
        %v1134 = vunpack.c.l.b16 %v1065
        %v1135 = vunpack.c.l.b16 %v1066
        %v1136 = vunpack.c.l.b16 %v1067
        %v1137 = vunpack.c.l.b16 %v1068
        %v1138 = vunpack.c.l.b16 %v1069
        %v1139 = vunpack.c.l.b16 %v1070
        %v1140 = vunpack.c.l.b16 %v1071
        %v1141 = vunpack.c.l.b16 %v1072
        %v1142 = vpack.c.b16 %v1110, %v1109
        %v1143 = vpack.c.b16 %v1112, %v1111
        %v1144 = vpack.c.b16 %v1114, %v1113
        %v1145 = vpack.c.b16 %v1116, %v1115
        %v1146 = vpack.c.b16 %v1118, %v1117
        %v1147 = vpack.c.b16 %v1120, %v1119
        %v1148 = vpack.c.b16 %v1122, %v1121
        %v1149 = vpack.c.b16 %v1124, %v1123
        %v1150 = vpack.c.b16 %v1126, %v1125
        %v1151 = vpack.c.b16 %v1128, %v1127
        %v1152 = vpack.c.b16 %v1130, %v1129
        %v1153 = vpack.c.b16 %v1132, %v1131
        %v1154 = vpack.c.b16 %v1134, %v1133
        %v1155 = vpack.c.b16 %v1136, %v1135
        %v1156 = vpack.c.b16 %v1138, %v1137
        %v1157 = vpack.c.b16 %v1140, %v1139
        %v1158 = vpack.c.b16 %v1141, %v1141
        %vm1175 = vcmask 7168
        %v1177 = vsel %vm1175, %v1075, 0
        %vm1179 = vcmask 1040384
        %v1180 = vsel 0, 4294967295, 65535
        %v1181 = vsel %vm1179, %v1180, 0
        %v1183 = vand.u32 %v1158, %v1181
        %1185 = vmatprep.subr.bf16.mxu0 0
        %1186 = vmatpush1.bf16.msra.mxu0 %v1149
        %1187 = vmatprep.subr.bf16.mxu0 0
        %1188 = vmatpush1.bf16.msra.mxu0 %v1148
        %1189 = vmatprep.subr.bf16.mxu0 0
        %1190 = vmatpush1.bf16.msra.mxu0 %v1147
        %1191 = vmatprep.subr.bf16.mxu0 0
        %1192 = vmatpush1.bf16.msra.mxu0 %v1146
        %1193 = vmatprep.subr.bf16.mxu0 0
        %1194 = vmatpush1.bf16.msra.mxu0 %v1145
        %1195 = vmatprep.subr.bf16.mxu0 0
        %1196 = vmatpush1.bf16.msra.mxu0 %v1144
        %1197 = vmatprep.subr.bf16.mxu0 0
        %1198 = vmatpush1.bf16.msra.mxu0 %v1143
        %1199 = vmatprep.subr.bf16.mxu0 0
        %1200 = vmatpush1.bf16.msra.mxu0 %v1142
        %1201 = vmatprep.subr.bf16.mxu0 0
        %1202 = vmatpush2.bf16.msra.mxu0 %v1157
        %1203 = vmatprep.subr.bf16.mxu0 0
        %1204 = vmatpush2.bf16.msra.mxu0 %v1156
        %1205 = vmatprep.subr.bf16.mxu0 0
        %1206 = vmatpush2.bf16.msra.mxu0 %v1155
        %1207 = vmatprep.subr.bf16.mxu0 0
        %1208 = vmatpush2.bf16.msra.mxu0 %v1154
        %1209 = vmatprep.subr.bf16.mxu0 0
        %1210 = vmatpush2.bf16.msra.mxu0 %v1153
        %1211 = vmatprep.subr.bf16.mxu0 0
        %1212 = vmatpush2.bf16.msra.mxu0 %v1152
        %1213 = vmatprep.subr.bf16.mxu0 0
        %1214 = vmatpush2.bf16.msra.mxu0 %v1151
        %1215 = vmatprep.subr.bf16.mxu0 0
        %1216 = vmatpush2.bf16.msra.mxu0 %v1150
        %1217 = vmatprep.mubr.bf16.mxu0 %v1074
        %1218 = vmatmul.mubr.bf16.gmra.mxu0 %v1073
        %v1219 = vpop.f32.mrf.mxu0
        %v1220 = vadd.f32 0.0, %v1219
        %v1221 = vpop.f32.mrf.mxu0
        %v1222 = vpop.f32.mrf.mxu0
        %v1223 = vpop.f32.mrf.mxu0
        %1224 = vdwg.mxu0
        %1225 = vmatprep.subr.bf16.mxu0 0
        %1226 = vmatpush1.bf16.msra.mxu0 0
        %1227 = vmatprep.subr.bf16.mxu0 0
        %1228 = vmatpush1.bf16.msra.mxu0 0
        %1229 = vmatprep.subr.bf16.mxu0 0
        %1230 = vmatpush1.bf16.msra.mxu0 0
        %1231 = vmatprep.subr.bf16.mxu0 0
        %1232 = vmatpush1.bf16.msra.mxu0 0
        %1233 = vmatprep.subr.bf16.mxu0 0
        %1234 = vmatpush1.bf16.msra.mxu0 0
        %1235 = vmatprep.subr.bf16.mxu0 0
        %1236 = vmatpush1.bf16.msra.mxu0 0
        %1237 = vmatprep.subr.bf16.mxu0 0
        %1238 = vmatpush1.bf16.msra.mxu0 0
        %1239 = vmatprep.subr.bf16.mxu0 0
        %1240 = vmatpush1.bf16.msra.mxu0 %v1183
        %1241 = vmatprep.subr.bf16.mxu0 0
        %1242 = vmatpush2.bf16.msra.mxu0 0
        %1243 = vmatprep.subr.bf16.mxu0 0
        %1244 = vmatpush2.bf16.msra.mxu0 0
        %1245 = vmatprep.subr.bf16.mxu0 0
        %1246 = vmatpush2.bf16.msra.mxu0 0
        %1247 = vmatprep.subr.bf16.mxu0 0
        %1248 = vmatpush2.bf16.msra.mxu0 0
        %1249 = vmatprep.subr.bf16.mxu0 0
        %1250 = vmatpush2.bf16.msra.mxu0 0
        %1251 = vmatprep.subr.bf16.mxu0 0
        %1252 = vmatpush2.bf16.msra.mxu0 0
        %1253 = vmatprep.subr.bf16.mxu0 0
        %1254 = vmatpush2.bf16.msra.mxu0 0
        %1255 = vmatprep.subr.bf16.mxu0 0
        %1256 = vmatpush2.bf16.msra.mxu0 0
        %1257 = vmatprep.mubr.bf16.mxu0 0
        %1258 = vmatmul.mubr.bf16.gmra.mxu0 %v1177
        %v1259 = vpop.f32.mrf.mxu0
        %v1260 = vadd.f32 %v1220, %v1259
        %v1261 = vpop.f32.mrf.mxu0
        %v1262 = vpop.f32.mrf.mxu0
        %v1263 = vpop.f32.mrf.mxu0
        %1264 = vdwg.mxu0
        %v1265 = vmax.f32 %v1260, 0.0
        %vm1266 = vcmask 982016
        %v1267 = vsel %vm1266, %v1265, 1.0
        %v1268 = vld [vmem:[%s4] sm:$0xf]
        %v1269 = vld [vmem:[%s4 + $0x4] sm:$0xf]
        %v1270 = vld [vmem:[%s4 + $0x8] sm:$0xf]
        %v1271 = vld [vmem:[%s4 + $0xc] sm:$0xf]
        %v1272 = vld [vmem:[%s4 + $0x10] sm:$0xf]
        %v1273 = vld [vmem:[%s4 + $0x14] sm:$0xf]
        %v1274 = vld [vmem:[%s4 + $0x18] sm:$0xf]
        %v1275 = vld [vmem:[%s4 + $0x1c] sm:$0xf]
        %v1276 = vld [vmem:[%s4 + $0x20] sm:$0xf]
        %v1277 = vld [vmem:[%s4 + $0x24] sm:$0xf]
        %v1278 = vld [vmem:[%s4 + $0x28] sm:$0xf]
        %v1279 = vld [vmem:[%s4 + $0x2c] sm:$0xf]
        %v1280 = vld [vmem:[%s4 + $0x30] sm:$0xf]
        %v1281 = vld [vmem:[%s4 + $0x34] sm:$0xf]
        %v1282 = vld [vmem:[%s4 + $0x38] sm:$0xf]
        %v1283 = vld [vmem:[%s4 + $0x3c] sm:$0x1]
        %v1284 = vpack.c.bf16 %v1267, %v1267
        %v1301 = vunpack.c.l.b16 %v1268
        %v1302 = vunpack.c.l.b16 %v1269
        %v1303 = vunpack.c.l.b16 %v1270
        %v1304 = vunpack.c.l.b16 %v1271
        %v1305 = vunpack.c.l.b16 %v1272
        %v1306 = vunpack.c.l.b16 %v1273
        %v1307 = vunpack.c.l.b16 %v1274
        %v1308 = vunpack.c.l.b16 %v1275
        %v1309 = vunpack.c.l.b16 %v1276
        %v1310 = vunpack.c.l.b16 %v1277
        %v1311 = vunpack.c.l.b16 %v1278
        %v1312 = vunpack.c.l.b16 %v1279
        %v1313 = vunpack.c.l.b16 %v1280
        %v1314 = vunpack.c.l.b16 %v1281
        %v1315 = vunpack.c.l.b16 %v1282
        %v1316 = vunpack.c.l.b16 %v1283
        %v1317 = vpack.c.b16 %v1302, %v1301
        %v1318 = vpack.c.b16 %v1304, %v1303
        %v1319 = vpack.c.b16 %v1306, %v1305
        %v1320 = vpack.c.b16 %v1308, %v1307
        %v1321 = vpack.c.b16 %v1310, %v1309
        %v1322 = vpack.c.b16 %v1312, %v1311
        %v1323 = vpack.c.b16 %v1314, %v1313
        %v1324 = vpack.c.b16 %v1316, %v1315
        %vm1332 = vcmask 990208
        %v1334 = vsel %vm1332, %v1284, 0
        %v1337 = vand.u32 %v1324, %v932
        %1339 = vmatprep.subr.bf16.mxu0 0
        %1340 = vmatpush1.bf16.msra.mxu0 %v1337
        %1341 = vmatprep.subr.bf16.mxu0 0
        %1342 = vmatpush1.bf16.msra.mxu0 %v1323
        %1343 = vmatprep.subr.bf16.mxu0 0
        %1344 = vmatpush1.bf16.msra.mxu0 %v1322
        %1345 = vmatprep.subr.bf16.mxu0 0
        %1346 = vmatpush1.bf16.msra.mxu0 %v1321
        %1347 = vmatprep.subr.bf16.mxu0 0
        %1348 = vmatpush1.bf16.msra.mxu0 %v1320
        %1349 = vmatprep.subr.bf16.mxu0 0
        %1350 = vmatpush1.bf16.msra.mxu0 %v1319
        %1351 = vmatprep.subr.bf16.mxu0 0
        %1352 = vmatpush1.bf16.msra.mxu0 %v1318
        %1353 = vmatprep.subr.bf16.mxu0 0
        %1354 = vmatpush1.bf16.msra.mxu0 %v1317
        %1355 = vmatprep.subr.bf16.mxu0 0
        %1356 = vmatpush2.bf16.msra.mxu0 0
        %1357 = vmatprep.subr.bf16.mxu0 0
        %1358 = vmatpush2.bf16.msra.mxu0 0
        %1359 = vmatprep.subr.bf16.mxu0 0
        %1360 = vmatpush2.bf16.msra.mxu0 0
        %1361 = vmatprep.subr.bf16.mxu0 0
        %1362 = vmatpush2.bf16.msra.mxu0 0
        %1363 = vmatprep.subr.bf16.mxu0 0
        %1364 = vmatpush2.bf16.msra.mxu0 0
        %1365 = vmatprep.subr.bf16.mxu0 0
        %1366 = vmatpush2.bf16.msra.mxu0 0
        %1367 = vmatprep.subr.bf16.mxu0 0
        %1368 = vmatpush2.bf16.msra.mxu0 0
        %1369 = vmatprep.subr.bf16.mxu0 0
        %1370 = vmatpush2.bf16.msra.mxu0 0
        %1371 = vmatprep.mubr.bf16.mxu0 0
        %1372 = vmatmul.mubr.bf16.gmra.mxu0 %v1334
        %v1373 = vpop.f32.mrf.mxu0
        %v1374 = vadd.f32 0.0, %v1373
        %v1375 = vpop.f32.mrf.mxu0
        %v1376 = vpop.f32.mrf.mxu0
        %v1377 = vpop.f32.mrf.mxu0
        %1378 = vdwg.mxu0
        %v1379 = vmax.f32 %v1374, 0.0
        %v1380 = vsel %vm365, %v1379, 1.0
        %v1381 = vld [vmem:[#allocation4] sm:$0xf]
        %v1382 = vld [vmem:[#allocation4 + $0x4] sm:$0xf]
        %v1383 = vld [vmem:[#allocation4 + $0x8] sm:$0xf]
        %v1384 = vld [vmem:[#allocation4 + $0xc] sm:$0xf]
        %v1385 = vld [vmem:[#allocation4 + $0x10] sm:$0xf]
        %v1386 = vld [vmem:[#allocation4 + $0x14] sm:$0xf]
        %v1387 = vld [vmem:[#allocation4 + $0x18] sm:$0xf]
        %v1388 = vld [vmem:[#allocation4 + $0x1c] sm:$0xf]
        %v1389 = vld [vmem:[#allocation4 + $0x20] sm:$0xf]
        %v1390 = vld [vmem:[#allocation4 + $0x24] sm:$0xf]
        %v1391 = vld [vmem:[#allocation4 + $0x28] sm:$0x7]
        %v1392 = vpack.c.bf16 %v1380, %v1380
        %v1404 = vunpack.c.l.b16 %v1381
        %v1405 = vunpack.c.l.b16 %v1382
        %v1406 = vunpack.c.l.b16 %v1383
        %v1407 = vunpack.c.l.b16 %v1384
        %v1408 = vunpack.c.l.b16 %v1385
        %v1409 = vunpack.c.l.b16 %v1386
        %v1410 = vunpack.c.l.b16 %v1387
        %v1411 = vunpack.c.l.b16 %v1388
        %v1412 = vunpack.c.l.b16 %v1389
        %v1413 = vunpack.c.l.b16 %v1390
        %v1414 = vunpack.c.l.b16 %v1391
        %v1415 = vpack.c.b16 %v1405, %v1404
        %v1416 = vpack.c.b16 %v1407, %v1406
        %v1417 = vpack.c.b16 %v1409, %v1408
        %v1418 = vpack.c.b16 %v1411, %v1410
        %v1419 = vpack.c.b16 %v1413, %v1412
        %v1420 = vpack.c.b16 %v1414, %v1414
        %vm1426 = vcmask 695296
        %v1428 = vsel %vm1426, %v1392, 0
        %vm1430 = vcmask 1041408
        %vm1431 = vcmask 1042432
        %v1432 = vsel %vm1430, 4294967295, 65535
        %v1433 = vsel %vm1431, %v1432, 0
        %v1435 = vand.u32 %v1420, %v1433
        %1437 = vmatprep.subr.bf16.mxu0 0
        %1438 = vmatpush1.bf16.msra.mxu0 0
        %1439 = vmatprep.subr.bf16.mxu0 0
        %1440 = vmatpush1.bf16.msra.mxu0 0
        %1441 = vmatprep.subr.bf16.mxu0 0
        %1442 = vmatpush1.bf16.msra.mxu0 %v1435
        %1443 = vmatprep.subr.bf16.mxu0 0
        %1444 = vmatpush1.bf16.msra.mxu0 %v1419
        %1445 = vmatprep.subr.bf16.mxu0 0
        %1446 = vmatpush1.bf16.msra.mxu0 %v1418
        %1447 = vmatprep.subr.bf16.mxu0 0
        %1448 = vmatpush1.bf16.msra.mxu0 %v1417
        %1449 = vmatprep.subr.bf16.mxu0 0
        %1450 = vmatpush1.bf16.msra.mxu0 %v1416
        %1451 = vmatprep.subr.bf16.mxu0 0
        %1452 = vmatpush1.bf16.msra.mxu0 %v1415
        %1453 = vmatprep.subr.bf16.mxu0 0
        %1454 = vmatpush2.bf16.msra.mxu0 0
        %1455 = vmatprep.subr.bf16.mxu0 0
        %1456 = vmatpush2.bf16.msra.mxu0 0
        %1457 = vmatprep.subr.bf16.mxu0 0
        %1458 = vmatpush2.bf16.msra.mxu0 0
        %1459 = vmatprep.subr.bf16.mxu0 0
        %1460 = vmatpush2.bf16.msra.mxu0 0
        %1461 = vmatprep.subr.bf16.mxu0 0
        %1462 = vmatpush2.bf16.msra.mxu0 0
        %1463 = vmatprep.subr.bf16.mxu0 0
        %1464 = vmatpush2.bf16.msra.mxu0 0
        %1465 = vmatprep.subr.bf16.mxu0 0
        %1466 = vmatpush2.bf16.msra.mxu0 0
        %1467 = vmatprep.subr.bf16.mxu0 0
        %1468 = vmatpush2.bf16.msra.mxu0 0
        %1469 = vmatprep.mubr.bf16.mxu0 0
        %1470 = vmatmul.mubr.bf16.gmra.mxu0 %v1428
        %v1471 = vpop.f32.mrf.mxu0
        %v1472 = vadd.f32 0.0, %v1471
        %v1473 = vpop.f32.mrf.mxu0
        %v1474 = vpop.f32.mrf.mxu0
        %v1475 = vpop.f32.mrf.mxu0
        %1476 = vdwg.mxu0
        %v1477 = vsel %vm1179, %v1472, -inf
        %1478 = vmax.xlane.f32.xlu0 %v1477
        %v1479 = vpop.xlane.xlu0 %1478
        %v1480 = vsub.f32 %v1472, %v1479
        %v1481 = vmul.f32 %v1480, 1.442695
        %v1482 = vpow.pop %v1481
        %v1483 = vsel %vm1179, %v1482, 0.0
        %1484 = vadd.xlane.f32.xlu0 %v1483
        %v1485 = vpop.xlane.xlu0 %1484
        %v1486 = vrcp.pop %v1485
        %v1487 = vmul.f32 %v1482, %v1486
        %v1488 = vlaneseq
        %v1489 = vshrl.u32 %v1488, 7
        %v1490 = vsub.s32 0, %v1489
        %v1491 = vrot.slane %v1487, %v1490
        %1492 = vst [vmem:[%s279] sm:$0xff] %v1491
        %p1493 = scmp.lt.s32.totalorder %s19, 1
        %s1494 = scalar_select %p1493, %s19, 1
        %s1495 = smul.addr %s1494, 8
        %s1496 = scalar_lea.vmem %s6, %s1495
        // Predicated region
        $region53: #{mnist_net_forward.1} parent=43 // pred_check
          %p1497 = pneg %p168
        $region54: #{mnist_net_forward.1} parent=43 // pred_check_branch
          %1499 = sbr.rel (%p1497) target = $region56
        $region55: #{mnist_net_forward.1} parent=43 // pred_region
          _
        $region56: #{mnist_net_forward.1} parent=43 // pred_fallthru
          _
      $region44: #{mnist_net_forward.1} parent=5 // pred_fallthru
        _
      %p1500 = scmp.le.s32.totalorder 2, %s14
      // Predicated region
      $region57: #{mnist_net_forward.1} parent=5 // pred_check
        %p1501 = pneg %p1500
      $region58: #{mnist_net_forward.1} parent=5 // pred_check_branch
        %1503 = sbr.rel (%p1501) target = $region60
      $region59: #{mnist_net_forward.1} parent=5 // pred_region
        %s1504 = ssub.s32 %s14, 2
        // Predicated region
        $region61: #{mnist_net_forward.1} parent=59 // pred_check
          %p1505 = pneg %p174
        $region62: #{mnist_net_forward.1} parent=59 // pred_check_branch
          %1507 = sbr.rel (%p1505) target = $region64
        $region63: #{mnist_net_forward.1} parent=59 // pred_region
          %p1508 = scmp.lt.s32.totalorder %s20, 1
          %s1509 = scalar_select %p1508, %s20, 1
          %s1510 = smul.addr %s1509, 8
          %s1511 = scalar_lea.vmem %s6, %s1510
        $region64: #{mnist_net_forward.1} parent=59 // pred_fallthru
          _
      $region60: #{mnist_net_forward.1} parent=5 // pred_fallthru
        _
    $region6: #{mnist_net_forward.1} parent=1 // loop_footer
      %s18 = sadd.s32 1, %s14
    $region7: #{mnist_net_forward.1} parent=1 // loop_footer_branch
      %13 = sbr.rel target = $region3
    $region8: #{mnist_net_forward.1} parent=1 // loop_exit
      _
    %1512 = vsyncpa [#allocation3], 1
    %s1513 = scalar_lea.sflag [#allocation3], 1
    %1514 = vsyncpa %s1513, 1
    %1515 = vsyncpa [#allocation5], 1

</llo_original>
